<compile_context>
chip_gen: v6e
topology: v6e:2x2x1
jax: 0.10.0
libtpu: 0.0.40
codegen_flags: <defaults>
</compile_context>

<pallas_src>
import functools

import jax
import jax.numpy as jnp
from jax import lax
from jax.experimental import pallas as pl
from jax.experimental.pallas import tpu as pltpu


def _round_up(x, m):
    return -(-x // m) * m


def _largest_divisor_leq(n, cap):
    for d in range(min(cap, n), 0, -1):
        if n % d == 0:
            return d
    return 1


# ---------------------------------------------------------------------------
# Fused kernel: depthwise KxK + pointwise 1x1 (+folded BN) + Hardswish
# ---------------------------------------------------------------------------
def _dwc_patch_embed_kernel(x_ref, wdw_ref, wpw_ref, b_ref, o_ref, xp_ref, *,
                            ksize, hh, ww, w1, pad, lp, band_rows):
    # x_ref   : (hh, ww, C)            full input plane of this batch element
    #                                  (resident across all row bands).
    # wdw_ref : (K*K, C)               depthwise taps, channel lane-dense.
    # wpw_ref : (C, C)                 pointwise weight (in, out), BN scale
    #                                  folded; bf16 or f32 per wrapper choice.
    # b_ref   : (1, C)                 folded BN bias (f32).
    # o_ref   : (band_rows, w1, C)     output row band (stride-1 positions).
    # xp_ref  : (h1+K-1, lp+ww+lp, C)  padded resident plane, f32 scratch.
    c = x_ref.shape[-1]
    wp = xp_ref.shape[1]
    hp = xp_ref.shape[0]
    ti = pl.program_id(1)

    # ---- once per batch element: build the padded plane in VMEM ----------
    # Halo-only zero fill (no full-plane wasted store) + sublane-aligned
    # interior copy (column offset lp is a multiple of 8 -> unmasked stores).
    @pl.when(ti == 0)
    def _fill_padded_plane():
        if pad > 0:
            zrow = jnp.zeros((pad, wp, c), jnp.float32)
            xp_ref[0:pad, :, :] = zrow                      # top halo rows
            xp_ref[pad + hh:, :, :] = zrow                  # bottom halo rows
            zcol = jnp.zeros((hp, lp, c), jnp.float32)
            xp_ref[:, 0:lp, :] = zcol                       # left halo columns
            xp_ref[:, lp + ww:, :] = zcol                   # right halo columns
        xp_ref[pad:pad + hh, lp:lp + ww, :] = x_ref[...].astype(jnp.float32)

    # ---- depthwise KxK conv for this row band (stride-1 positions) --------
    r0 = pl.multiple_of(ti * band_rows, band_rows)          # first output row
    wspan = w1 + ksize - 1                                   # columns for all kj
    acc = jnp.zeros((band_rows, w1, c), jnp.float32)
    for ki in range(ksize):                                  # static taps
        # one wide load per ki; kj shifts are in-register static slices
        wide = xp_ref[pl.ds(r0 + ki, band_rows), pl.ds(lp - pad, wspan), :]
        for kj in range(ksize):
            tap = wdw_ref[pl.ds(ki * ksize + kj, 1), :]      # (1, C) broadcast
            acc = acc + tap * wide[:, kj:kj + w1, :]

    # ---- pointwise 1x1 conv (BN folded) as one MXU matmul + Hardswish -----
    a2 = acc.reshape(band_rows * w1, c).astype(wpw_ref.dtype)
    y = jnp.dot(a2, wpw_ref[...], preferred_element_type=jnp.float32)
    y = y + b_ref[...]
    y = y * jnp.clip(y + 3.0, 0.0, 6.0) * (1.0 / 6.0)        # Hardswish
    o_ref[...] = y.reshape(band_rows, w1, c).astype(o_ref.dtype)


# ---------------------------------------------------------------------------
# Wrapper: BN folding + pallas_call (+ stride subsampling)
# ---------------------------------------------------------------------------
def dwc_patch_embed(x_nhwc, params, *, ksize, stride=1, eps=1e-5,
                    band_rows=None, use_bf16_matmul=True):
    """DWCPatchEmbed.forward, NHWC layout (channel on the TPU lane axis).

    The depthwise conv requires in_ch == out_ch (true depthwise), which is how
    DWCPatchEmbed is used inside MPViT.
    """
    b, hh, ww, c = x_nhwc.shape
    pad = (ksize - 1) // 2
    h1 = hh + 2 * pad - ksize + 1            # stride-1 conv output rows
    w1 = ww + 2 * pad - ksize + 1            # stride-1 conv output cols
    assert h1 > 0 and w1 > 0
    lp = _round_up(pad, 8)                   # sublane-aligned left column halo
    wp = lp + ww + lp

    if band_rows is None:
        # Small bands keep the accumulator in vregs; at real MPViT sizes
        # (W >= 28) this still gives an MXU M dim of band_rows * w1 >= 256.
        band_rows = _largest_divisor_leq(h1, 8)
    assert h1 % band_rows == 0
    num_bands = h1 // band_rows

    # Fold the eval-mode BatchNorm into the pointwise conv (free, done once):
    #   BN(pw(z)) = scale * (W_pw z) + (beta - mean*scale),  scale = g/sqrt(v+eps)
    scale = params["gamma"] / jnp.sqrt(params["var"] + eps)               # (C,)
    w_pw = (params["w_pw"] * scale[:, None]).T                            # (Cin, Cout)
    if use_bf16_matmul:
        w_pw = w_pw.astype(jnp.bfloat16)     # bf16-native MXU on v5e/v6e/v7x
    b_fold = (params["beta"] - params["mean"] * scale).reshape(1, c)
    b_fold = b_fold.astype(jnp.float32)
    # Depthwise weights: torch (C, 1, K, K) -> (K*K, C), channel lane-dense.
    w_dw = params["w_dw"].reshape(c, ksize * ksize).T.astype(jnp.float32)

    kernel = functools.partial(
        _dwc_patch_embed_kernel, ksize=ksize, hh=hh, ww=ww, w1=w1,
        pad=pad, lp=lp, band_rows=band_rows)

    out = pl.pallas_call(
        kernel,
        out_shape=jax.ShapeDtypeStruct((b, h1, w1, c), x_nhwc.dtype),
        grid=(b, num_bands),
        in_specs=[
            # full plane per batch; constant over the band axis -> DMA'd once
            pl.BlockSpec((None, hh, ww, c), lambda bi, ti: (bi, 0, 0, 0)),
            pl.BlockSpec((ksize * ksize, c), lambda bi, ti: (0, 0)),
            pl.BlockSpec((c, c), lambda bi, ti: (0, 0)),
            pl.BlockSpec((1, c), lambda bi, ti: (0, 0)),
        ],
        out_specs=pl.BlockSpec((None, band_rows, w1, c),
                               lambda bi, ti: (bi, ti, 0, 0)),
        scratch_shapes=[
            pltpu.VMEM((h1 + ksize - 1, wp, c), jnp.float32),   # padded plane
        ],
        # Band axis must stay "arbitrary" (padded-plane scratch is filled at
        # band 0 and reused by the later bands of the same batch element).
        compiler_params=pltpu.CompilerParams(
            dimension_semantics=("parallel", "arbitrary")),
    )(x_nhwc, w_dw, w_pw, b_fold)

    if stride > 1:
        # Exact: stride-s conv with pad=(K-1)//2 == stride-1 conv subsampled.
        # TODO(synk): fuse the stride into the kernel to skip the redundant
        # pointwise work at the discarded positions.
        out = out[:, ::stride, ::stride, :]
    return out


# ---------------------------------------------------------------------------
# Deterministic parameter init (shapes per DWConv2dBN.__init__, torch layout)
# ---------------------------------------------------------------------------
def init_params(key, c, ksize):
    ks = jax.random.split(key, 4)
    n_dw = ksize * ksize * c            # torch init: N(0, sqrt(2/n)), n=k*k*out
    n_pw = 1 * 1 * c
    return {
        "w_dw": jnp.sqrt(2.0 / n_dw)
                * jax.random.normal(ks[0], (c, 1, ksize, ksize), jnp.float32),
        "w_pw": jnp.sqrt(2.0 / n_pw)
                * jax.random.normal(ks[1], (c, c), jnp.float32),
        "gamma": jnp.ones((c,), jnp.float32),     # bn_weight_init=1
        "beta": jnp.zeros((c,), jnp.float32),
        # eval-mode running statistics (deterministic, non-trivial)
        "mean": 0.1 * jax.random.normal(ks[2], (c,), jnp.float32),
        "var": 1.0 + 0.1 * jax.random.uniform(ks[3], (c,), jnp.float32),
    }


# ---------------------------------------------------------------------------
# Pure-JAX reference (same NHWC layout) for correctness checks
# ---------------------------------------------------------------------------
def reference(x_nhwc, params, *, ksize, stride=1, eps=1e-5):
    b, hh, ww, c = x_nhwc.shape
    pad = (ksize - 1) // 2
    hi = lax.Precision.HIGHEST
    w_dw = params["w_dw"].transpose(2, 3, 1, 0)          # (K, K, 1, C)  HWIO
    dw = lax.conv_general_dilated(
        x_nhwc, w_dw, window_strides=(stride, stride),
        padding=((pad, pad), (pad, pad)),
        dimension_numbers=("NHWC", "HWIO", "NHWC"),
        feature_group_count=c, precision=hi)
    pw = jnp.einsum("bhwc,oc->bhwo", dw, params["w_pw"], precision=hi)
    scale = params["gamma"] / jnp.sqrt(params["var"] + eps)
    y = (pw - params["mean"]) * scale + params["beta"]
    return y * jnp.clip(y + 3.0, 0.0, 6.0) / 6.0          # Hardswish


def _check(out, ref, *, atol, rtol, name):
    if not jnp.allclose(out, ref, atol=atol, rtol=rtol):
        max_err = float(jnp.max(jnp.abs(out - ref)))
        raise AssertionError(f"{name}: mismatch vs reference, max abs err = {max_err}")


if __name__ == "__main__":
    batch, c = 2, 128          # C = 128 -> fully lane-dense vregs and stores
    hh = ww = 16
    ksize = 3                  # MPViT DWCPatchEmbed uses 3x3 depthwise convs

    key = jax.random.PRNGKey(0)
    kx, kp = jax.random.split(key)
    x = jax.random.normal(kx, (batch, hh, ww, c), jnp.float32)   # NHWC
    params = init_params(kp, c, ksize)

    # stride=1, bf16 MXU pointwise (default fast path).  bf16 operands with f32
    # accumulation over a length-128 contraction -> loosened tolerance.
    out1 = jax.block_until_ready(dwc_patch_embed(x, params, ksize=ksize, stride=1))
    ref1 = reference(x, params, ksize=ksize, stride=1)
    assert out1.shape == ref1.shape == (batch, hh, ww, c)
    _check(out1, ref1, atol=2e-2, rtol=2e-2, name="stride=1 bf16")

    # stride=1, full f32 matmul path (tight tolerance, structural check).
    out1f = jax.block_until_ready(
        dwc_patch_embed(x, params, ksize=ksize, stride=1, use_bf16_matmul=False))
    _check(out1f, ref1, atol=1e-3, rtol=1e-3, name="stride=1 f32")

    # stride=2 (MPViT patch-merging configuration).
    out2 = jax.block_until_ready(dwc_patch_embed(x, params, ksize=ksize, stride=2))
    ref2 = reference(x, params, ksize=ksize, stride=2)
    assert out2.shape == ref2.shape == (batch, 8, 8, c)
    _check(out2, ref2, atol=2e-2, rtol=2e-2, name="stride=2 bf16")

    print("KERNEL_OK")
</pallas_src>

<mosaic_0001>
module attributes {stable_mosaic.version = 11 : i64} {
  func.func @_dwc_patch_embed_kernel(%arg0: i32, %arg1: i32, %arg2: memref<1x16x16x128xf32, #tpu.memory_space<vmem>>, %arg3: memref<9x128xf32, #tpu.memory_space<vmem>>, %arg4: memref<128x128xbf16, #tpu.memory_space<vmem>>, %arg5: memref<1x128xf32, #tpu.memory_space<vmem>>, %arg6: memref<1x8x16x128xf32, #tpu.memory_space<vmem>>, %arg7: memref<18x32x128xf32, #tpu.memory_space<vmem>>) attributes {dimension_semantics = [#tpu.dimension_semantics<parallel>, #tpu.dimension_semantics<arbitrary>], iteration_bounds = array<i64: 2, 2>, scalar_prefetch = 0 : i64, scratch_operands = 1 : i64, tpu.core_type = #tpu.core_type<tc>, window_params = [{transform_indices = @transform_0, window_bounds = array<i64: 1, 16, 16, 128>}, {pipeline_mode = #tpu.pipeline_mode<synchronous>, transform_indices = @transform_1, window_bounds = array<i64: 9, 128>}, {pipeline_mode = #tpu.pipeline_mode<synchronous>, transform_indices = @transform_2, window_bounds = array<i64: 128, 128>}, {pipeline_mode = #tpu.pipeline_mode<synchronous>, transform_indices = @transform_3, window_bounds = array<i64: 1, 128>}, {transform_indices = @transform_4, window_bounds = array<i64: 1, 8, 16, 128>}]} {
    %c0_i32 = arith.constant 0 : i32
    %0 = arith.cmpi eq, %arg1, %c0_i32 : i32
    %1 = arith.extui %0 : i1 to i32
    %c0_i32_0 = arith.constant 0 : i32
    %2 = arith.cmpi ne, %1, %c0_i32_0 : i32
    scf.if %2 {
      %cst_30 = arith.constant 0.000000e+00 : f32
      %89 = vector.broadcast %cst_30 : f32 to vector<1x32x128xf32>
      %c0_31 = arith.constant 0 : index
      %c0_32 = arith.constant 0 : index
      %c0_33 = arith.constant 0 : index
      %90 = vector.load %arg7[%c0_31, %c0_32, %c0_33] : memref<18x32x128xf32, #tpu.memory_space<vmem>>, vector<1x32x128xf32>
      tpu.vector_store %arg7[%c0_31, %c0_32, %c0_33], %89 {strides = array<i32>} : memref<18x32x128xf32, #tpu.memory_space<vmem>>, vector<1x32x128xf32>,
      %c17 = arith.constant 17 : index
      %c0_34 = arith.constant 0 : index
      %c0_35 = arith.constant 0 : index
      %91 = vector.load %arg7[%c17, %c0_34, %c0_35] : memref<18x32x128xf32, #tpu.memory_space<vmem>>, vector<1x32x128xf32>
      tpu.vector_store %arg7[%c17, %c0_34, %c0_35], %89 {strides = array<i32>} : memref<18x32x128xf32, #tpu.memory_space<vmem>>, vector<1x32x128xf32>,
      %cst_36 = arith.constant 0.000000e+00 : f32
      %92 = vector.broadcast %cst_36 : f32 to vector<18x8x128xf32>
      %c0_37 = arith.constant 0 : index
      %c0_38 = arith.constant 0 : index
      %c0_39 = arith.constant 0 : index
      %93 = vector.load %arg7[%c0_37, %c0_38, %c0_39] : memref<18x32x128xf32, #tpu.memory_space<vmem>>, vector<18x8x128xf32>
      tpu.vector_store %arg7[%c0_37, %c0_38, %c0_39], %92 {strides = array<i32>} : memref<18x32x128xf32, #tpu.memory_space<vmem>>, vector<18x8x128xf32>,
      %c0_40 = arith.constant 0 : index
      %c24 = arith.constant 24 : index
      %c0_41 = arith.constant 0 : index
      %94 = vector.load %arg7[%c0_40, %c24, %c0_41] : memref<18x32x128xf32, #tpu.memory_space<vmem>>, vector<18x8x128xf32>
      tpu.vector_store %arg7[%c0_40, %c24, %c0_41], %92 {strides = array<i32>} : memref<18x32x128xf32, #tpu.memory_space<vmem>>, vector<18x8x128xf32>,
      %c0_42 = arith.constant 0 : index
      %c0_43 = arith.constant 0 : index
      %c0_44 = arith.constant 0 : index
      %c0_45 = arith.constant 0 : index
      %95 = vector.load %arg2[%c0_42, %c0_43, %c0_44, %c0_45] : memref<1x16x16x128xf32, #tpu.memory_space<vmem>>, vector<1x16x16x128xf32>
      %96 = vector.shape_cast %95 : vector<1x16x16x128xf32> to vector<16x16x128xf32>
      %c1_46 = arith.constant 1 : index
      %c8_47 = arith.constant 8 : index
      %c0_48 = arith.constant 0 : index
      %97 = vector.load %arg7[%c1_46, %c8_47, %c0_48] : memref<18x32x128xf32, #tpu.memory_space<vmem>>, vector<16x16x128xf32>
      tpu.vector_store %arg7[%c1_46, %c8_47, %c0_48], %96 {strides = array<i32>} : memref<18x32x128xf32, #tpu.memory_space<vmem>>, vector<16x16x128xf32>,
    } else {
    }
    %c8_i32 = arith.constant 8 : i32
    %3 = arith.muli %arg1, %c8_i32 : i32
    %4 = tpu.assume_multiple %3, 8 : i32
    %cst = arith.constant 0.000000e+00 : f32
    %5 = vector.broadcast %cst : f32 to vector<8x16x128xf32>
    %c0_i32_1 = arith.constant 0 : i32
    %6 = arith.addi %4, %c0_i32_1 : i32
    %7 = arith.index_cast %6 : i32 to index
    %c7 = arith.constant 7 : index
    %c0 = arith.constant 0 : index
    %8 = vector.load %arg7[%7, %c7, %c0] : memref<18x32x128xf32, #tpu.memory_space<vmem>>, vector<8x18x128xf32>
    %c0_2 = arith.constant 0 : index
    %c0_3 = arith.constant 0 : index
    %9 = vector.load %arg3[%c0_2, %c0_3] : memref<9x128xf32, #tpu.memory_space<vmem>>, vector<1x128xf32>
    %10 = vector.extract_strided_slice %8 {offsets = [0, 0, 0], sizes = [8, 16, 128], strides = [1, 1, 1]} : vector<8x18x128xf32> to vector<8x16x128xf32>
    %11 = vector.shape_cast %9 : vector<1x128xf32> to vector<1x1x128xf32>
    %12 = vector.broadcast %11 : vector<1x1x128xf32> to vector<8x16x128xf32>
    %13 = arith.mulf %12, %10 : vector<8x16x128xf32>
    %14 = arith.addf %5, %13 : vector<8x16x128xf32>
    %c1 = arith.constant 1 : index
    %c0_4 = arith.constant 0 : index
    %15 = vector.load %arg3[%c1, %c0_4] : memref<9x128xf32, #tpu.memory_space<vmem>>, vector<1x128xf32>
    %16 = vector.extract_strided_slice %8 {offsets = [0, 1, 0], sizes = [8, 16, 128], strides = [1, 1, 1]} : vector<8x18x128xf32> to vector<8x16x128xf32>
    %17 = vector.shape_cast %15 : vector<1x128xf32> to vector<1x1x128xf32>
    %18 = vector.broadcast %17 : vector<1x1x128xf32> to vector<8x16x128xf32>
    %19 = arith.mulf %18, %16 : vector<8x16x128xf32>
    %20 = arith.addf %14, %19 : vector<8x16x128xf32>
    %c2 = arith.constant 2 : index
    %c0_5 = arith.constant 0 : index
    %21 = vector.load %arg3[%c2, %c0_5] : memref<9x128xf32, #tpu.memory_space<vmem>>, vector<1x128xf32>
    %22 = vector.extract_strided_slice %8 {offsets = [0, 2, 0], sizes = [8, 16, 128], strides = [1, 1, 1]} : vector<8x18x128xf32> to vector<8x16x128xf32>
    %23 = vector.shape_cast %21 : vector<1x128xf32> to vector<1x1x128xf32>
    %24 = vector.broadcast %23 : vector<1x1x128xf32> to vector<8x16x128xf32>
    %25 = arith.mulf %24, %22 : vector<8x16x128xf32>
    %26 = arith.addf %20, %25 : vector<8x16x128xf32>
    %c1_i32 = arith.constant 1 : i32
    %27 = arith.addi %4, %c1_i32 : i32
    %28 = arith.index_cast %27 : i32 to index
    %c7_6 = arith.constant 7 : index
    %c0_7 = arith.constant 0 : index
    %29 = vector.load %arg7[%28, %c7_6, %c0_7] : memref<18x32x128xf32, #tpu.memory_space<vmem>>, vector<8x18x128xf32>
    %c3 = arith.constant 3 : index
    %c0_8 = arith.constant 0 : index
    %30 = vector.load %arg3[%c3, %c0_8] : memref<9x128xf32, #tpu.memory_space<vmem>>, vector<1x128xf32>
    %31 = vector.extract_strided_slice %29 {offsets = [0, 0, 0], sizes = [8, 16, 128], strides = [1, 1, 1]} : vector<8x18x128xf32> to vector<8x16x128xf32>
    %32 = vector.shape_cast %30 : vector<1x128xf32> to vector<1x1x128xf32>
    %33 = vector.broadcast %32 : vector<1x1x128xf32> to vector<8x16x128xf32>
    %34 = arith.mulf %33, %31 : vector<8x16x128xf32>
    %35 = arith.addf %26, %34 : vector<8x16x128xf32>
    %c4 = arith.constant 4 : index
    %c0_9 = arith.constant 0 : index
    %36 = vector.load %arg3[%c4, %c0_9] : memref<9x128xf32, #tpu.memory_space<vmem>>, vector<1x128xf32>
    %37 = vector.extract_strided_slice %29 {offsets = [0, 1, 0], sizes = [8, 16, 128], strides = [1, 1, 1]} : vector<8x18x128xf32> to vector<8x16x128xf32>
    %38 = vector.shape_cast %36 : vector<1x128xf32> to vector<1x1x128xf32>
    %39 = vector.broadcast %38 : vector<1x1x128xf32> to vector<8x16x128xf32>
    %40 = arith.mulf %39, %37 : vector<8x16x128xf32>
    %41 = arith.addf %35, %40 : vector<8x16x128xf32>
    %c5 = arith.constant 5 : index
    %c0_10 = arith.constant 0 : index
    %42 = vector.load %arg3[%c5, %c0_10] : memref<9x128xf32, #tpu.memory_space<vmem>>, vector<1x128xf32>
    %43 = vector.extract_strided_slice %29 {offsets = [0, 2, 0], sizes = [8, 16, 128], strides = [1, 1, 1]} : vector<8x18x128xf32> to vector<8x16x128xf32>
    %44 = vector.shape_cast %42 : vector<1x128xf32> to vector<1x1x128xf32>
    %45 = vector.broadcast %44 : vector<1x1x128xf32> to vector<8x16x128xf32>
    %46 = arith.mulf %45, %43 : vector<8x16x128xf32>
    %47 = arith.addf %41, %46 : vector<8x16x128xf32>
    %c2_i32 = arith.constant 2 : i32
    %48 = arith.addi %4, %c2_i32 : i32
    %49 = arith.index_cast %48 : i32 to index
    %c7_11 = arith.constant 7 : index
    %c0_12 = arith.constant 0 : index
    %50 = vector.load %arg7[%49, %c7_11, %c0_12] : memref<18x32x128xf32, #tpu.memory_space<vmem>>, vector<8x18x128xf32>
    %c6 = arith.constant 6 : index
    %c0_13 = arith.constant 0 : index
    %51 = vector.load %arg3[%c6, %c0_13] : memref<9x128xf32, #tpu.memory_space<vmem>>, vector<1x128xf32>
    %52 = vector.extract_strided_slice %50 {offsets = [0, 0, 0], sizes = [8, 16, 128], strides = [1, 1, 1]} : vector<8x18x128xf32> to vector<8x16x128xf32>
    %53 = vector.shape_cast %51 : vector<1x128xf32> to vector<1x1x128xf32>
    %54 = vector.broadcast %53 : vector<1x1x128xf32> to vector<8x16x128xf32>
    %55 = arith.mulf %54, %52 : vector<8x16x128xf32>
    %56 = arith.addf %47, %55 : vector<8x16x128xf32>
    %c7_14 = arith.constant 7 : index
    %c0_15 = arith.constant 0 : index
    %57 = vector.load %arg3[%c7_14, %c0_15] : memref<9x128xf32, #tpu.memory_space<vmem>>, vector<1x128xf32>
    %58 = vector.extract_strided_slice %50 {offsets = [0, 1, 0], sizes = [8, 16, 128], strides = [1, 1, 1]} : vector<8x18x128xf32> to vector<8x16x128xf32>
    %59 = vector.shape_cast %57 : vector<1x128xf32> to vector<1x1x128xf32>
    %60 = vector.broadcast %59 : vector<1x1x128xf32> to vector<8x16x128xf32>
    %61 = arith.mulf %60, %58 : vector<8x16x128xf32>
    %62 = arith.addf %56, %61 : vector<8x16x128xf32>
    %c8 = arith.constant 8 : index
    %c0_16 = arith.constant 0 : index
    %63 = vector.load %arg3[%c8, %c0_16] : memref<9x128xf32, #tpu.memory_space<vmem>>, vector<1x128xf32>
    %64 = vector.extract_strided_slice %50 {offsets = [0, 2, 0], sizes = [8, 16, 128], strides = [1, 1, 1]} : vector<8x18x128xf32> to vector<8x16x128xf32>
    %65 = vector.shape_cast %63 : vector<1x128xf32> to vector<1x1x128xf32>
    %66 = vector.broadcast %65 : vector<1x1x128xf32> to vector<8x16x128xf32>
    %67 = arith.mulf %66, %64 : vector<8x16x128xf32>
    %68 = arith.addf %62, %67 : vector<8x16x128xf32>
    %69 = vector.shape_cast %68 : vector<8x16x128xf32> to vector<128x128xf32>
    %70 = arith.truncf %69 : vector<128x128xf32> to vector<128x128xbf16>
    %c0_17 = arith.constant 0 : index
    %c0_18 = arith.constant 0 : index
    %71 = vector.load %arg4[%c0_17, %c0_18] : memref<128x128xbf16, #tpu.memory_space<vmem>>, vector<128x128xbf16>
    %cst_19 = arith.constant dense<0.000000e+00> : vector<128x128xf32>
    %72 = tpu.matmul %70, %71, %cst_19 {dimension_numbers = #tpu.dot_dimension_numbers<[1], [0], [0], [1], [0, 0, 1, 1], [], []>} : vector<128x128xbf16>, vector<128x128xbf16>, vector<128x128xf32> -> vector<128x128xf32>
    %c0_20 = arith.constant 0 : index
    %c0_21 = arith.constant 0 : index
    %73 = vector.load %arg5[%c0_20, %c0_21] : memref<1x128xf32, #tpu.memory_space<vmem>>, vector<1x128xf32>
    %74 = vector.broadcast %73 : vector<1x128xf32> to vector<128x128xf32>
    %75 = arith.addf %72, %74 : vector<128x128xf32>
    %cst_22 = arith.constant 3.000000e+00 : f32
    %76 = vector.broadcast %cst_22 : f32 to vector<128x128xf32>
    %77 = arith.addf %75, %76 : vector<128x128xf32>
    %cst_23 = arith.constant 0.000000e+00 : f32
    %cst_24 = arith.constant 6.000000e+00 : f32
    %78 = vector.broadcast %cst_23 : f32 to vector<128x128xf32>
    %79 = arith.maximumf %78, %77 : vector<128x128xf32>
    %80 = vector.broadcast %cst_24 : f32 to vector<128x128xf32>
    %81 = arith.minimumf %80, %79 : vector<128x128xf32>
    %82 = arith.mulf %75, %81 : vector<128x128xf32>
    %cst_25 = arith.constant 0.166666672 : f32
    %83 = vector.broadcast %cst_25 : f32 to vector<128x128xf32>
    %84 = arith.mulf %82, %83 : vector<128x128xf32>
    %85 = vector.shape_cast %84 : vector<128x128xf32> to vector<8x16x128xf32>
    %c0_26 = arith.constant 0 : index
    %c0_27 = arith.constant 0 : index
    %c0_28 = arith.constant 0 : index
    %c0_29 = arith.constant 0 : index
    %86 = vector.load %arg6[%c0_26, %c0_27, %c0_28, %c0_29] : memref<1x8x16x128xf32, #tpu.memory_space<vmem>>, vector<1x8x16x128xf32>
    %87 = vector.shape_cast %86 : vector<1x8x16x128xf32> to vector<8x16x128xf32>
    %88 = vector.shape_cast %85 : vector<8x16x128xf32> to vector<1x8x16x128xf32>
    tpu.vector_store %arg6[%c0_26, %c0_27, %c0_28, %c0_29], %88 {strides = array<i32>} : memref<1x8x16x128xf32, #tpu.memory_space<vmem>>, vector<1x8x16x128xf32>,
    return
  }
  func.func @transform_0(%arg0: i32, %arg1: i32) -> (i32, i32, i32, i32) {
    %c0_i32 = arith.constant 0 : i32
    %c0_i32_0 = arith.constant 0 : i32
    %c0_i32_1 = arith.constant 0 : i32
    %c0_i32_2 = arith.constant 0 : i32
    return %arg0, %c0_i32, %c0_i32_0, %c0_i32_1 : i32, i32, i32, i32
  }
  func.func @transform_1(%arg0: i32, %arg1: i32) -> (i32, i32) {
    %c0_i32 = arith.constant 0 : i32
    %c0_i32_0 = arith.constant 0 : i32
    %c0_i32_1 = arith.constant 0 : i32
    return %c0_i32, %c0_i32_0 : i32, i32
  }
  func.func @transform_2(%arg0: i32, %arg1: i32) -> (i32, i32) {
    %c0_i32 = arith.constant 0 : i32
    %c0_i32_0 = arith.constant 0 : i32
    %c0_i32_1 = arith.constant 0 : i32
    return %c0_i32, %c0_i32_0 : i32, i32
  }
  func.func @transform_3(%arg0: i32, %arg1: i32) -> (i32, i32) {
    %c0_i32 = arith.constant 0 : i32
    %c0_i32_0 = arith.constant 0 : i32
    %c0_i32_1 = arith.constant 0 : i32
    return %c0_i32, %c0_i32_0 : i32, i32
  }
  func.func @transform_4(%arg0: i32, %arg1: i32) -> (i32, i32, i32, i32) {
    %c0_i32 = arith.constant 0 : i32
    %c0_i32_0 = arith.constant 0 : i32
    %c0_i32_1 = arith.constant 0 : i32
    return %arg0, %arg1, %c0_i32, %c0_i32_0 : i32, i32, i32, i32
  }
}

</mosaic_0001>

<llo_original>
// kernel: tpu_custom_call.1
$region0: #{tpu_custom_call.1}
  #allocation0 [shape = 'u32[]', space=smem, size = 0x4, offset = 0x4, fixed_abs, tag = 'smem constant byte address 0x4 - core index']
  #allocation1 [shape = 'u32[144,128]{1,0:T(1,128)}', space=vmem, size = 0x12000, scoped, tag = 'internal scratch']
  #allocation2 [shape = 'f32[18,32,128]{2,1,0:T(8,128)}', space=vmem, size = 0x48000, scoped, tag = 'scratch operand']
  %s0 = inlined_call_operand.hbm [shape: f32[2,16,16,128], index: 0, kind: input, shape index: {}]
  %s1 = inlined_call_operand.hbm [shape: f32[9,128], index: 1, kind: input, shape index: {}]
  %s2 = inlined_call_operand.hbm [shape: bf16[128,128], index: 2, kind: input, shape index: {}]
  %s3 = inlined_call_operand.vmem [shape: f32[1,128], index: 3, kind: input, shape index: {}]
  %s4 = inlined_call_operand.hbm [shape: f32[2,16,16,128], index: 4, kind: output, shape index: {}]
  %s5 = sld [smem:[#allocation0]]
  $region65: #{tpu_custom_call.1} parent=0
    _
  %s7 = ssub.s32 1, %s5
  %s8 = scalar_select 0, %s7, %s5
  $region1: #{tpu_custom_call.1} parent=0
    #allocation3 [shape = 'u8[262144]{0}', space=vmem, size = 0x40000, scoped, tag = 'input window, operand 0']
    #allocation4 [shape = 's32[2]{0}', space=sflag, size = 0x8, scoped, tag = 'scoped memory for tpu_custom_call.1']
    #allocation5 [shape = 's32[2]{0}', space=sflag, size = 0x8, scoped, tag = 'scoped memory for tpu_custom_call.1']
    #allocation6 [shape = 'u8[8192]{0}', space=vmem, size = 0x2000, scoped, tag = 'input window, operand 1, single buffered']
    #allocation7 [shape = 's32[1]{0}', space=sflag, size = 0x4, scoped, tag = 'scoped memory for tpu_custom_call.1']
    #allocation8 [shape = 'u8[32768]{0}', space=vmem, size = 0x8000, scoped, tag = 'input window, operand 2, single buffered']
    #allocation9 [shape = 'u8[131072]{0}', space=vmem, size = 0x20000, scoped, tag = 'output window, operand 0']
    %9 = vsyncpa [#allocation4], 0
    %s10 = scalar_lea.sflag [#allocation4], 1
    %11 = vsyncpa %s10, 0
    %12 = vsyncpa [#allocation7], 0
    %13 = vsyncpa [#allocation5], 0
    %s14 = scalar_lea.sflag [#allocation5], 1
    %15 = vsyncpa %s14, 0
    loop: start=0, step=1, limit=6
    $region2: #{tpu_custom_call.1} parent=1 // loop_pre_header
      _
    $region3: #{tpu_custom_call.1} parent=1 // loop_header
      %s17 = sphi 0, %s21
      %p18 = scmp.ge.s32.totalorder %s17, 6
      %s24 = sphi 0, %s36
      %s25 = sphi 0, %s32
      %s26 = sphi 0, %s24
      %s27 = sphi 0, %s25
      %s28 = sphi 0, %s26
      %s29 = sphi 0, %s27
      %s39 = sphi 0, %s41
      %s42 = sphi 0, %s39
      %s43 = sphi 0, %s42
      %s59 = sphi 0, %s43
      %s63 = sphi 0, %s63
      %s65 = sphi 0, %s63
      %s66 = sphi 0, %s65
      %s80 = sphi 0, %s66
      %s84 = sphi 0, %s84
      %s86 = sphi 0, %s84
      %s87 = sphi 0, %s86
      %s101 = sphi 0, %s87
      %s105 = sphi 0, %s105
      %s107 = sphi 0, %s105
      %s108 = sphi 0, %s107
      %s122 = sphi 0, %s108
      %s130 = sphi 0, %s132
      %s133 = sphi 0, %s130
      %s134 = sphi 0, %s133
      %s150 = sphi 0, %s134
    $region4: #{tpu_custom_call.1} parent=1 // loop_header_branch
      %20 = sbr.rel (%p18) target = $region8
    $region5: #{tpu_custom_call.1} parent=1 // loop_body
      %s22 = ssub.s32 %s17, 1
      %s23 = ssub.s32 %s17, 2
      %s30 = sadd.s32 1, %s25
      %p31 = scmp.ge.s32.totalorder %s30, 2
      %s32 = scalar_select %p31, 0, %s30
      %s33 = sadd.s32 1, %s24
      %s34 = scalar_select %p31, %s33, %s24
      %p35 = scmp.ge.s32.totalorder %s34, 2
      %s36 = scalar_select %p35, 0, %s34
      %s37 = ssub.s32 %s24, %s36
      %p38 = scmp.eq.s32.totalorder %s37, 0
      %s40 = sadd.s32 %s39, 1
      %s41 = scalar_select %p38, %s39, %s40
      %p44 = pneg %p38
      %p45 = scmp.eq.s32.totalorder %s17, 3
      %p46 = por %p44, %p45
      %p47 = scmp.ne.s32.totalorder %s39, %s42
      %p48 = scmp.eq.s32.totalorder %s17, 0
      %p49 = por %p47, %p48
      %p50 = scmp.ne.s32.totalorder %s39, %s42
      %p51 = scmp.eq.s32.totalorder %s22, 3
      %p52 = por %p50, %p51
      %p53 = scmp.ne.s32.totalorder %s42, %s43
      %p54 = scmp.eq.s32.totalorder %s22, 0
      %p55 = por %p53, %p54
      %p56 = scmp.ne.s32.totalorder %s42, %s43
      %p57 = scmp.eq.s32.totalorder %s23, 3
      %p58 = por %p56, %p57
      %p60 = scmp.ne.s32.totalorder %s43, %s59
      %p61 = scmp.eq.s32.totalorder %s23, 0
      %p62 = por %p60, %p61
      %s64 = sadd.s32 %s63, 1
      %p67 = scmp.eq.s32.totalorder %s17, 3
      %p68 = scmp.ne.s32.totalorder %s63, %s65
      %p69 = scmp.eq.s32.totalorder %s17, 0
      %p70 = por %p68, %p69
      %p71 = scmp.ne.s32.totalorder %s63, %s65
      %p72 = scmp.eq.s32.totalorder %s22, 3
      %p73 = por %p71, %p72
      %p74 = scmp.ne.s32.totalorder %s65, %s66
      %p75 = scmp.eq.s32.totalorder %s22, 0
      %p76 = por %p74, %p75
      %p77 = scmp.ne.s32.totalorder %s65, %s66
      %p78 = scmp.eq.s32.totalorder %s23, 3
      %p79 = por %p77, %p78
      %p81 = scmp.ne.s32.totalorder %s66, %s80
      %p82 = scmp.eq.s32.totalorder %s23, 0
      %p83 = por %p81, %p82
      %s85 = sadd.s32 %s84, 1
      %p88 = scmp.eq.s32.totalorder %s17, 3
      %p89 = scmp.ne.s32.totalorder %s84, %s86
      %p90 = scmp.eq.s32.totalorder %s17, 0
      %p91 = por %p89, %p90
      %p92 = scmp.ne.s32.totalorder %s84, %s86
      %p93 = scmp.eq.s32.totalorder %s22, 3
      %p94 = por %p92, %p93
      %p95 = scmp.ne.s32.totalorder %s86, %s87
      %p96 = scmp.eq.s32.totalorder %s22, 0
      %p97 = por %p95, %p96
      %p98 = scmp.ne.s32.totalorder %s86, %s87
      %p99 = scmp.eq.s32.totalorder %s23, 3
      %p100 = por %p98, %p99
      %p102 = scmp.ne.s32.totalorder %s87, %s101
      %p103 = scmp.eq.s32.totalorder %s23, 0
      %p104 = por %p102, %p103
      %s106 = sadd.s32 %s105, 1
      %p109 = scmp.eq.s32.totalorder %s17, 3
      %p110 = scmp.ne.s32.totalorder %s105, %s107
      %p111 = scmp.eq.s32.totalorder %s17, 0
      %p112 = por %p110, %p111
      %p113 = scmp.ne.s32.totalorder %s105, %s107
      %p114 = scmp.eq.s32.totalorder %s22, 3
      %p115 = por %p113, %p114
      %p116 = scmp.ne.s32.totalorder %s107, %s108
      %p117 = scmp.eq.s32.totalorder %s22, 0
      %p118 = por %p116, %p117
      %p119 = scmp.ne.s32.totalorder %s107, %s108
      %p120 = scmp.eq.s32.totalorder %s23, 3
      %p121 = por %p119, %p120
      %p123 = scmp.ne.s32.totalorder %s108, %s122
      %p124 = scmp.eq.s32.totalorder %s23, 0
      %p125 = por %p123, %p124
      %s126 = ssub.s32 %s24, %s36
      %s127 = ssub.s32 %s25, %s32
      %s128 = sor.u32 %s126, %s127
      %p129 = scmp.eq.s32.totalorder %s128, 0
      %s131 = sadd.s32 %s130, 1
      %s132 = scalar_select %p129, %s130, %s131
      %p135 = pneg %p129
      %p136 = scmp.eq.s32.totalorder %s17, 3
      %p137 = por %p135, %p136
      %p138 = scmp.ne.s32.totalorder %s130, %s133
      %p139 = scmp.eq.s32.totalorder %s17, 0
      %p140 = por %p138, %p139
      %p141 = scmp.ne.s32.totalorder %s130, %s133
      %p142 = scmp.eq.s32.totalorder %s22, 3
      %p143 = por %p141, %p142
      %p144 = scmp.ne.s32.totalorder %s133, %s134
      %p145 = scmp.eq.s32.totalorder %s22, 0
      %p146 = por %p144, %p145
      %p147 = scmp.ne.s32.totalorder %s133, %s134
      %p148 = scmp.eq.s32.totalorder %s23, 3
      %p149 = por %p147, %p148
      %p151 = scmp.ne.s32.totalorder %s134, %s150
      %p152 = scmp.eq.s32.totalorder %s23, 0
      %p153 = por %p151, %p152
      %p154 = scmp.le.s32.totalorder 1, %s17
      %p155 = scmp.lt.s32.totalorder %s17, 5
      %p156 = pnand %p154, %p155
      %p157 = pneg %p156
      // Predicated region
      $region9: #{tpu_custom_call.1} parent=5 // pred_check
        _
      $region10: #{tpu_custom_call.1} parent=5 // pred_check_branch
        %159 = sbr.rel (%p156) target = $region12
      $region11: #{tpu_custom_call.1} parent=5 // pred_region
        %s160 = ssub.s32 %s17, 1
        // Predicated region
        $region13: #{tpu_custom_call.1} parent=11 // pred_check
          %p161 = pneg %p76
        $region14: #{tpu_custom_call.1} parent=11 // pred_check_branch
          %163 = sbr.rel (%p161) target = $region16
        $region15: #{tpu_custom_call.1} parent=11 // pred_region
          %s165 = ssub.s32 256, 256
          %166 = vsyncadd [#allocation7], %s165
          %s167 = sshll.u32 [#allocation6], 4
          %s168 = int_to_ptr.vmem [resolvable:$true] %s167
          %173 = dma.hbm_to_vmem [thread:$0]  %s1, 256, %s168, [#allocation7], 128, 128, 8
        $region16: #{tpu_custom_call.1} parent=11 // pred_fallthru
          _
        // Predicated region
        $region17: #{tpu_custom_call.1} parent=11 // pred_check
          %p174 = pneg %p97
        $region18: #{tpu_custom_call.1} parent=11 // pred_check_branch
          %176 = sbr.rel (%p174) target = $region20
        $region19: #{tpu_custom_call.1} parent=11 // pred_region
          %s178 = ssub.s32 1024, 1024
          %179 = vsyncadd [#allocation7], %s178
          %s180 = sshll.u32 [#allocation8], 4
          %s181 = int_to_ptr.vmem [resolvable:$true] %s180
          %186 = dma.hbm_to_vmem [thread:$0]  %s2, 1024, %s181, [#allocation7], 64, 64, 4
        $region20: #{tpu_custom_call.1} parent=11 // pred_fallthru
          _
        // Predicated region
        $region21: #{tpu_custom_call.1} parent=11 // pred_check
          %p187 = pneg %p118
        $region22: #{tpu_custom_call.1} parent=11 // pred_check_branch
          %189 = sbr.rel (%p187) target = $region24
        $region23: #{tpu_custom_call.1} parent=11 // pred_region
          _
        $region24: #{tpu_custom_call.1} parent=11 // pred_fallthru
          _
      $region12: #{tpu_custom_call.1} parent=5 // pred_fallthru
        _
      %p190 = scmp.lt.s32.totalorder %s17, 4
      // Predicated region
      $region25: #{tpu_custom_call.1} parent=5 // pred_check
        %p191 = pneg %p190
      $region26: #{tpu_custom_call.1} parent=5 // pred_check_branch
        %193 = sbr.rel (%p191) target = $region28
      $region27: #{tpu_custom_call.1} parent=5 // pred_region
        // Predicated region
        $region29: #{tpu_custom_call.1} parent=27 // pred_check
          %p194 = pneg %p49
        $region30: #{tpu_custom_call.1} parent=27 // pred_check_branch
          %196 = sbr.rel (%p194) target = $region32
        $region31: #{tpu_custom_call.1} parent=27 // pred_region
          %s197 = sand.u32 %s39, 1
          %s198 = scalar_lea.sflag [#allocation4], %s197
          %s199 = sand.u32 %s39, 1
          %s200 = smul.addr %s199, 256
          %s201 = scalar_lea.vmem [#allocation3], %s200
          %s203 = ssub.s32 4096, 4096
          %204 = vsyncadd %s198, %s203
          %s205 = smul.addr %s24, 32
          %s206 = smul.addr %s205, 128
          %s207 = scalar_lea.hbm %s0, %s206
          %s208 = sshll.u32 %s201, 4
          %s209 = int_to_ptr.vmem [resolvable:$true] %s208
          %214 = dma.hbm_to_vmem [thread:$0]  %s207, 4096, %s209, %s198, 128, 128, 8
        $region32: #{tpu_custom_call.1} parent=27 // pred_fallthru
          _
      $region28: #{tpu_custom_call.1} parent=5 // pred_fallthru
        _
      %p215 = scmp.le.s32.totalorder 1, %s17
      %p216 = scmp.lt.s32.totalorder %s17, 5
      %p217 = pnand %p215, %p216
      %p218 = pneg %p217
      // Predicated region
      $region33: #{tpu_custom_call.1} parent=5 // pred_check
        _
      $region34: #{tpu_custom_call.1} parent=5 // pred_check_branch
        %220 = sbr.rel (%p217) target = $region36
      $region35: #{tpu_custom_call.1} parent=5 // pred_region
        %s221 = ssub.s32 %s17, 1
        %s222 = sand.u32 %s42, 1
        %s223 = scalar_lea.sflag [#allocation4], %s222
        %s224 = sand.u32 %s42, 1
        %s225 = smul.addr %s224, 256
        %s226 = scalar_lea.vmem [#allocation3], %s225
        // Predicated region
        $region37: #{tpu_custom_call.1} parent=35 // pred_check
          %p227 = pneg %p55
        $region38: #{tpu_custom_call.1} parent=35 // pred_check_branch
          %229 = sbr.rel (%p227) target = $region40
        $region39: #{tpu_custom_call.1} parent=35 // pred_region
          %230 = dma.done %s223, 4096
        $region40: #{tpu_custom_call.1} parent=35 // pred_fallthru
          _
        // Predicated region
        $region41: #{tpu_custom_call.1} parent=35 // pred_check
          %p231 = pneg %p76
        $region42: #{tpu_custom_call.1} parent=35 // pred_check_branch
          %233 = sbr.rel (%p231) target = $region44
        $region43: #{tpu_custom_call.1} parent=35 // pred_region
          %234 = dma.done [#allocation7], 256
        $region44: #{tpu_custom_call.1} parent=35 // pred_fallthru
          _
        // Predicated region
        $region45: #{tpu_custom_call.1} parent=35 // pred_check
          %p235 = pneg %p97
        $region46: #{tpu_custom_call.1} parent=35 // pred_check_branch
          %237 = sbr.rel (%p235) target = $region48
        $region47: #{tpu_custom_call.1} parent=35 // pred_region
          %238 = dma.done [#allocation7], 1024
        $region48: #{tpu_custom_call.1} parent=35 // pred_fallthru
          _
        %s239 = sand.u32 %s42, 1
        %s240 = scalar_lea.sflag [#allocation4], %s239
        %s241 = sand.u32 %s42, 1
        %s242 = smul.addr %s241, 256
        %s243 = scalar_lea.vmem [#allocation3], %s242
        %p244 = pneg %p55
        %p245 = pneg %p52
        %p246 = pneg %p76
        %p247 = pneg %p73
        %p248 = pneg %p97
        %p249 = pneg %p94
        %p250 = pneg %p118
        %p251 = pneg %p115
        %p252 = pneg %p146
        %p253 = pneg %p143
        %s254 = sand.u32 %s133, 1
        %s255 = scalar_lea.sflag [#allocation5], %s254
        %s256 = sand.u32 %s133, 1
        %s257 = smul.addr %s256, 128
        %s258 = scalar_lea.vmem [#allocation9], %s257
        %s259 = smul.u32 8, %s27
        %p261 = scmp.eq.s32.totalorder %s27, 0
        // Predicated region
        $region49: #{tpu_custom_call.1} parent=35 // pred_check
          %p262 = pneg %p261
        $region50: #{tpu_custom_call.1} parent=35 // pred_check_branch
          %264 = sbr.rel (%p262) target = $region52
        $region51: #{tpu_custom_call.1} parent=35 // pred_region
          %265 = vst [vmem:[#allocation2] sm:$0xff] 0.0
          %266 = vst [vmem:[#allocation2 + $0x8] sm:$0xff] 0.0
          %267 = vst [vmem:[#allocation2 + $0x10] sm:$0xff] 0.0
          %268 = vst [vmem:[#allocation2 + $0x18] sm:$0xff] 0.0
          %s269 = scalar_lea.vmem [#allocation2], 544
          %270 = vst [vmem:[%s269] sm:$0xff] 0.0
          %271 = vst [vmem:[%s269 + $0x8] sm:$0xff] 0.0
          %272 = vst [vmem:[%s269 + $0x10] sm:$0xff] 0.0
          %273 = vst [vmem:[%s269 + $0x18] sm:$0xff] 0.0
          %274 = vst [vmem:[#allocation2] sm:$0xff] 0.0
          %275 = vst [vmem:[#allocation2 + $0x20] sm:$0xff] 0.0
          %276 = vst [vmem:[#allocation2 + $0x40] sm:$0xff] 0.0
          %277 = vst [vmem:[#allocation2 + $0x60] sm:$0xff] 0.0
          %278 = vst [vmem:[#allocation2 + $0x80] sm:$0xff] 0.0
          %279 = vst [vmem:[#allocation2 + $0xa0] sm:$0xff] 0.0
          %280 = vst [vmem:[#allocation2 + $0xc0] sm:$0xff] 0.0
          %281 = vst [vmem:[#allocation2 + $0xe0] sm:$0xff] 0.0
          %282 = vst [vmem:[#allocation2 + $0x100] sm:$0xff] 0.0
          %283 = vst [vmem:[#allocation2 + $0x120] sm:$0xff] 0.0
          %284 = vst [vmem:[#allocation2 + $0x140] sm:$0xff] 0.0
          %285 = vst [vmem:[#allocation2 + $0x160] sm:$0xff] 0.0
          %286 = vst [vmem:[#allocation2 + $0x180] sm:$0xff] 0.0
          %287 = vst [vmem:[#allocation2 + $0x1a0] sm:$0xff] 0.0
          %288 = vst [vmem:[#allocation2 + $0x1c0] sm:$0xff] 0.0
          %289 = vst [vmem:[#allocation2 + $0x1e0] sm:$0xff] 0.0
          %290 = vst [vmem:[#allocation2 + $0x200] sm:$0xff] 0.0
          %291 = vst [vmem:[#allocation2 + $0x220] sm:$0xff] 0.0
          %292 = vst [vmem:[#allocation2 + $0x18] sm:$0xff] 0.0
          %293 = vst [vmem:[#allocation2 + $0x38] sm:$0xff] 0.0
          %294 = vst [vmem:[#allocation2 + $0x58] sm:$0xff] 0.0
          %295 = vst [vmem:[#allocation2 + $0x78] sm:$0xff] 0.0
          %296 = vst [vmem:[#allocation2 + $0x98] sm:$0xff] 0.0
          %297 = vst [vmem:[#allocation2 + $0xb8] sm:$0xff] 0.0
          %298 = vst [vmem:[#allocation2 + $0xd8] sm:$0xff] 0.0
          %299 = vst [vmem:[#allocation2 + $0xf8] sm:$0xff] 0.0
          %300 = vst [vmem:[#allocation2 + $0x118] sm:$0xff] 0.0
          %301 = vst [vmem:[#allocation2 + $0x138] sm:$0xff] 0.0
          %302 = vst [vmem:[#allocation2 + $0x158] sm:$0xff] 0.0
          %303 = vst [vmem:[#allocation2 + $0x178] sm:$0xff] 0.0
          %304 = vst [vmem:[#allocation2 + $0x198] sm:$0xff] 0.0
          %305 = vst [vmem:[#allocation2 + $0x1b8] sm:$0xff] 0.0
          %306 = vst [vmem:[#allocation2 + $0x1d8] sm:$0xff] 0.0
          %307 = vst [vmem:[#allocation2 + $0x1f8] sm:$0xff] 0.0
          %308 = vst [vmem:[#allocation2 + $0x218] sm:$0xff] 0.0
          %309 = vst [vmem:[#allocation2 + $0x238] sm:$0xff] 0.0
          %v310 = vld [vmem:[%s226] sm:$0xff]
          %v311 = vld [vmem:[%s226 + $0x8] sm:$0xff]
          %v312 = vld [vmem:[%s226 + $0x10] sm:$0xff]
          %v313 = vld [vmem:[%s226 + $0x18] sm:$0xff]
          %v314 = vld [vmem:[%s226 + $0x20] sm:$0xff]
          %v315 = vld [vmem:[%s226 + $0x28] sm:$0xff]
          %v316 = vld [vmem:[%s226 + $0x30] sm:$0xff]
          %v317 = vld [vmem:[%s226 + $0x38] sm:$0xff]
          %v318 = vld [vmem:[%s226 + $0x40] sm:$0xff]
          %v319 = vld [vmem:[%s226 + $0x48] sm:$0xff]
          %v320 = vld [vmem:[%s226 + $0x50] sm:$0xff]
          %v321 = vld [vmem:[%s226 + $0x58] sm:$0xff]
          %v322 = vld [vmem:[%s226 + $0x60] sm:$0xff]
          %v323 = vld [vmem:[%s226 + $0x68] sm:$0xff]
          %v324 = vld [vmem:[%s226 + $0x70] sm:$0xff]
          %v325 = vld [vmem:[%s226 + $0x78] sm:$0xff]
          %v326 = vld [vmem:[%s226 + $0x80] sm:$0xff]
          %v327 = vld [vmem:[%s226 + $0x88] sm:$0xff]
          %v328 = vld [vmem:[%s226 + $0x90] sm:$0xff]
          %v329 = vld [vmem:[%s226 + $0x98] sm:$0xff]
          %v330 = vld [vmem:[%s226 + $0xa0] sm:$0xff]
          %v331 = vld [vmem:[%s226 + $0xa8] sm:$0xff]
          %v332 = vld [vmem:[%s226 + $0xb0] sm:$0xff]
          %v333 = vld [vmem:[%s226 + $0xb8] sm:$0xff]
          %v334 = vld [vmem:[%s226 + $0xc0] sm:$0xff]
          %v335 = vld [vmem:[%s226 + $0xc8] sm:$0xff]
          %v336 = vld [vmem:[%s226 + $0xd0] sm:$0xff]
          %v337 = vld [vmem:[%s226 + $0xd8] sm:$0xff]
          %v338 = vld [vmem:[%s226 + $0xe0] sm:$0xff]
          %v339 = vld [vmem:[%s226 + $0xe8] sm:$0xff]
          %v340 = vld [vmem:[%s226 + $0xf0] sm:$0xff]
          %v341 = vld [vmem:[%s226 + $0xf8] sm:$0xff]
          %s342 = scalar_lea.vmem [#allocation2], 32
          %343 = vst [vmem:[%s342 + $0x8] sm:$0xff] %v310
          %344 = vst [vmem:[%s342 + $0x10] sm:$0xff] %v311
          %345 = vst [vmem:[%s342 + $0x28] sm:$0xff] %v312
          %346 = vst [vmem:[%s342 + $0x30] sm:$0xff] %v313
          %347 = vst [vmem:[%s342 + $0x48] sm:$0xff] %v314
          %348 = vst [vmem:[%s342 + $0x50] sm:$0xff] %v315
          %349 = vst [vmem:[%s342 + $0x68] sm:$0xff] %v316
          %350 = vst [vmem:[%s342 + $0x70] sm:$0xff] %v317
          %351 = vst [vmem:[%s342 + $0x88] sm:$0xff] %v318
          %352 = vst [vmem:[%s342 + $0x90] sm:$0xff] %v319
          %353 = vst [vmem:[%s342 + $0xa8] sm:$0xff] %v320
          %354 = vst [vmem:[%s342 + $0xb0] sm:$0xff] %v321
          %355 = vst [vmem:[%s342 + $0xc8] sm:$0xff] %v322
          %356 = vst [vmem:[%s342 + $0xd0] sm:$0xff] %v323
          %357 = vst [vmem:[%s342 + $0xe8] sm:$0xff] %v324
          %358 = vst [vmem:[%s342 + $0xf0] sm:$0xff] %v325
          %359 = vst [vmem:[%s342 + $0x108] sm:$0xff] %v326
          %360 = vst [vmem:[%s342 + $0x110] sm:$0xff] %v327
          %361 = vst [vmem:[%s342 + $0x128] sm:$0xff] %v328
          %362 = vst [vmem:[%s342 + $0x130] sm:$0xff] %v329
          %363 = vst [vmem:[%s342 + $0x148] sm:$0xff] %v330
          %364 = vst [vmem:[%s342 + $0x150] sm:$0xff] %v331
          %365 = vst [vmem:[%s342 + $0x168] sm:$0xff] %v332
          %366 = vst [vmem:[%s342 + $0x170] sm:$0xff] %v333
          %367 = vst [vmem:[%s342 + $0x188] sm:$0xff] %v334
          %368 = vst [vmem:[%s342 + $0x190] sm:$0xff] %v335
          %369 = vst [vmem:[%s342 + $0x1a8] sm:$0xff] %v336
          %370 = vst [vmem:[%s342 + $0x1b0] sm:$0xff] %v337
          %371 = vst [vmem:[%s342 + $0x1c8] sm:$0xff] %v338
          %372 = vst [vmem:[%s342 + $0x1d0] sm:$0xff] %v339
          %373 = vst [vmem:[%s342 + $0x1e8] sm:$0xff] %v340
          %374 = vst [vmem:[%s342 + $0x1f0] sm:$0xff] %v341
        $region52: #{tpu_custom_call.1} parent=35 // pred_fallthru
          _
        %s375 = smul.u32 %s27, 8
        %s376 = smul.u32 %s375, 32
        %s377 = scalar_lea.vmem [#allocation2], %s376
        %v378 = vld [vmem:[%s377 + $0x7] sm:$0xff]
        %v379 = vld [vmem:[%s377 + $0xf] sm:$0xff]
        %v380 = vld [vmem:[%s377 + $0x17] sm:$0x3]
        %v381 = vld [vmem:[%s377 + $0x27] sm:$0xff]
        %v382 = vld [vmem:[%s377 + $0x2f] sm:$0xff]
        %v383 = vld [vmem:[%s377 + $0x37] sm:$0x3]
        %v384 = vld [vmem:[%s377 + $0x47] sm:$0xff]
        %v385 = vld [vmem:[%s377 + $0x4f] sm:$0xff]
        %v386 = vld [vmem:[%s377 + $0x57] sm:$0x3]
        %v387 = vld [vmem:[%s377 + $0x67] sm:$0xff]
        %v388 = vld [vmem:[%s377 + $0x6f] sm:$0xff]
        %v389 = vld [vmem:[%s377 + $0x77] sm:$0x3]
        %v390 = vld [vmem:[%s377 + $0x87] sm:$0xff]
        %v391 = vld [vmem:[%s377 + $0x8f] sm:$0xff]
        %v392 = vld [vmem:[%s377 + $0x97] sm:$0x3]
        %v393 = vld [vmem:[%s377 + $0xa7] sm:$0xff]
        %v394 = vld [vmem:[%s377 + $0xaf] sm:$0xff]
        %v395 = vld [vmem:[%s377 + $0xb7] sm:$0x3]
        %v396 = vld [vmem:[%s377 + $0xc7] sm:$0xff]
        %v397 = vld [vmem:[%s377 + $0xcf] sm:$0xff]
        %v398 = vld [vmem:[%s377 + $0xd7] sm:$0x3]
        %v399 = vld [vmem:[%s377 + $0xe7] sm:$0xff]
        %v400 = vld [vmem:[%s377 + $0xef] sm:$0xff]
        %v401 = vld [vmem:[%s377 + $0xf7] sm:$0x3]
        %v402 = vld [vmem:[#allocation6] sm:$0x1]
        %v403 = vlaneseq
        %v404 = vshrl.u32 %v403, 7
        %v405 = vsub.s32 0, %v404
        %v406 = vrot.slane %v402, %v405
        %v407 = vmul.f32 %v406, %v378
        %v408 = vmul.f32 %v406, %v379
        %v409 = vmul.f32 %v406, %v381
        %v410 = vmul.f32 %v406, %v382
        %v411 = vmul.f32 %v406, %v384
        %v412 = vmul.f32 %v406, %v385
        %v413 = vmul.f32 %v406, %v387
        %v414 = vmul.f32 %v406, %v388
        %v415 = vmul.f32 %v406, %v390
        %v416 = vmul.f32 %v406, %v391
        %v417 = vmul.f32 %v406, %v393
        %v418 = vmul.f32 %v406, %v394
        %v419 = vmul.f32 %v406, %v396
        %v420 = vmul.f32 %v406, %v397
        %v421 = vmul.f32 %v406, %v399
        %v422 = vmul.f32 %v406, %v400
        %v423 = vadd.f32 %v407, 0.0
        %v424 = vadd.f32 %v408, 0.0
        %v425 = vadd.f32 %v409, 0.0
        %v426 = vadd.f32 %v410, 0.0
        %v427 = vadd.f32 %v411, 0.0
        %v428 = vadd.f32 %v412, 0.0
        %v429 = vadd.f32 %v413, 0.0
        %v430 = vadd.f32 %v414, 0.0
        %v431 = vadd.f32 %v415, 0.0
        %v432 = vadd.f32 %v416, 0.0
        %v433 = vadd.f32 %v417, 0.0
        %v434 = vadd.f32 %v418, 0.0
        %v435 = vadd.f32 %v419, 0.0
        %v436 = vadd.f32 %v420, 0.0
        %v437 = vadd.f32 %v421, 0.0
        %v438 = vadd.f32 %v422, 0.0
        %v439 = vld [vmem:[#allocation6 + $0x1] sm:$0x1]
        %v440 = vlaneseq
        %v441 = vshrl.u32 %v440, 7
        %v442 = vsub.s32 0, %v441
        %v443 = vrot.slane %v439, %v442
        %v444 = vmul.f32 %v443, %v378
        %v445 = vmul.f32 %v443, %v379
        %v446 = vmul.f32 %v443, %v380
        %v447 = vmul.f32 %v443, %v381
        %v448 = vmul.f32 %v443, %v382
        %v449 = vmul.f32 %v443, %v383
        %v450 = vmul.f32 %v443, %v384
        %v451 = vmul.f32 %v443, %v385
        %v452 = vmul.f32 %v443, %v386
        %v453 = vmul.f32 %v443, %v387
        %v454 = vmul.f32 %v443, %v388
        %v455 = vmul.f32 %v443, %v389
        %v456 = vmul.f32 %v443, %v390
        %v457 = vmul.f32 %v443, %v391
        %v458 = vmul.f32 %v443, %v392
        %v459 = vmul.f32 %v443, %v393
        %v460 = vmul.f32 %v443, %v394
        %v461 = vmul.f32 %v443, %v395
        %v462 = vmul.f32 %v443, %v396
        %v463 = vmul.f32 %v443, %v397
        %v464 = vmul.f32 %v443, %v398
        %v465 = vmul.f32 %v443, %v399
        %v466 = vmul.f32 %v443, %v400
        %v467 = vmul.f32 %v443, %v401
        %vm492 = vcmask 1046528
        %v493 = vrot.slane %v444, 1
        %v494 = vrot.slane %v445, 1
        %v495 = vsel %vm492, %v493, %v494
        %v496 = vrot.slane %v446, 1
        %v497 = vsel %vm492, %v494, %v496
        %v498 = vrot.slane %v447, 1
        %v499 = vrot.slane %v448, 1
        %v500 = vsel %vm492, %v498, %v499
        %v501 = vrot.slane %v449, 1
        %v502 = vsel %vm492, %v499, %v501
        %v503 = vrot.slane %v450, 1
        %v504 = vrot.slane %v451, 1
        %v505 = vsel %vm492, %v503, %v504
        %v506 = vrot.slane %v452, 1
        %v507 = vsel %vm492, %v504, %v506
        %v508 = vrot.slane %v453, 1
        %v509 = vrot.slane %v454, 1
        %v510 = vsel %vm492, %v508, %v509
        %v511 = vrot.slane %v455, 1
        %v512 = vsel %vm492, %v509, %v511
        %v513 = vrot.slane %v456, 1
        %v514 = vrot.slane %v457, 1
        %v515 = vsel %vm492, %v513, %v514
        %v516 = vrot.slane %v458, 1
        %v517 = vsel %vm492, %v514, %v516
        %v518 = vrot.slane %v459, 1
        %v519 = vrot.slane %v460, 1
        %v520 = vsel %vm492, %v518, %v519
        %v521 = vrot.slane %v461, 1
        %v522 = vsel %vm492, %v519, %v521
        %v523 = vrot.slane %v462, 1
        %v524 = vrot.slane %v463, 1
        %v525 = vsel %vm492, %v523, %v524
        %v526 = vrot.slane %v464, 1
        %v527 = vsel %vm492, %v524, %v526
        %v528 = vrot.slane %v465, 1
        %v529 = vrot.slane %v466, 1
        %v530 = vsel %vm492, %v528, %v529
        %v531 = vrot.slane %v467, 1
        %v532 = vsel %vm492, %v529, %v531
        %v549 = vadd.f32 %v423, %v495
        %v550 = vadd.f32 %v424, %v497
        %v551 = vadd.f32 %v425, %v500
        %v552 = vadd.f32 %v426, %v502
        %v553 = vadd.f32 %v427, %v505
        %v554 = vadd.f32 %v428, %v507
        %v555 = vadd.f32 %v429, %v510
        %v556 = vadd.f32 %v430, %v512
        %v557 = vadd.f32 %v431, %v515
        %v558 = vadd.f32 %v432, %v517
        %v559 = vadd.f32 %v433, %v520
        %v560 = vadd.f32 %v434, %v522
        %v561 = vadd.f32 %v435, %v525
        %v562 = vadd.f32 %v436, %v527
        %v563 = vadd.f32 %v437, %v530
        %v564 = vadd.f32 %v438, %v532
        %v565 = vld [vmem:[#allocation6 + $0x2] sm:$0x1]
        %v566 = vlaneseq
        %v567 = vshrl.u32 %v566, 7
        %v568 = vsub.s32 0, %v567
        %v569 = vrot.slane %v565, %v568
        %v570 = vmul.f32 %v569, %v378
        %v571 = vmul.f32 %v569, %v379
        %v572 = vmul.f32 %v569, %v380
        %v573 = vmul.f32 %v569, %v381
        %v574 = vmul.f32 %v569, %v382
        %v575 = vmul.f32 %v569, %v383
        %v576 = vmul.f32 %v569, %v384
        %v577 = vmul.f32 %v569, %v385
        %v578 = vmul.f32 %v569, %v386
        %v579 = vmul.f32 %v569, %v387
        %v580 = vmul.f32 %v569, %v388
        %v581 = vmul.f32 %v569, %v389
        %v582 = vmul.f32 %v569, %v390
        %v583 = vmul.f32 %v569, %v391
        %v584 = vmul.f32 %v569, %v392
        %v585 = vmul.f32 %v569, %v393
        %v586 = vmul.f32 %v569, %v394
        %v587 = vmul.f32 %v569, %v395
        %v588 = vmul.f32 %v569, %v396
        %v589 = vmul.f32 %v569, %v397
        %v590 = vmul.f32 %v569, %v398
        %v591 = vmul.f32 %v569, %v399
        %v592 = vmul.f32 %v569, %v400
        %v593 = vmul.f32 %v569, %v401
        %vm618 = vcmask 1045504
        %v619 = vrot.slane %v570, 2
        %v620 = vrot.slane %v571, 2
        %v621 = vsel %vm618, %v619, %v620
        %v622 = vrot.slane %v572, 2
        %v623 = vsel %vm618, %v620, %v622
        %v624 = vrot.slane %v573, 2
        %v625 = vrot.slane %v574, 2
        %v626 = vsel %vm618, %v624, %v625
        %v627 = vrot.slane %v575, 2
        %v628 = vsel %vm618, %v625, %v627
        %v629 = vrot.slane %v576, 2
        %v630 = vrot.slane %v577, 2
        %v631 = vsel %vm618, %v629, %v630
        %v632 = vrot.slane %v578, 2
        %v633 = vsel %vm618, %v630, %v632
        %v634 = vrot.slane %v579, 2
        %v635 = vrot.slane %v580, 2
        %v636 = vsel %vm618, %v634, %v635
        %v637 = vrot.slane %v581, 2
        %v638 = vsel %vm618, %v635, %v637
        %v639 = vrot.slane %v582, 2
        %v640 = vrot.slane %v583, 2
        %v641 = vsel %vm618, %v639, %v640
        %v642 = vrot.slane %v584, 2
        %v643 = vsel %vm618, %v640, %v642
        %v644 = vrot.slane %v585, 2
        %v645 = vrot.slane %v586, 2
        %v646 = vsel %vm618, %v644, %v645
        %v647 = vrot.slane %v587, 2
        %v648 = vsel %vm618, %v645, %v647
        %v649 = vrot.slane %v588, 2
        %v650 = vrot.slane %v589, 2
        %v651 = vsel %vm618, %v649, %v650
        %v652 = vrot.slane %v590, 2
        %v653 = vsel %vm618, %v650, %v652
        %v654 = vrot.slane %v591, 2
        %v655 = vrot.slane %v592, 2
        %v656 = vsel %vm618, %v654, %v655
        %v657 = vrot.slane %v593, 2
        %v658 = vsel %vm618, %v655, %v657
        %v675 = vadd.f32 %v549, %v621
        %v676 = vadd.f32 %v550, %v623
        %v677 = vadd.f32 %v551, %v626
        %v678 = vadd.f32 %v552, %v628
        %v679 = vadd.f32 %v553, %v631
        %v680 = vadd.f32 %v554, %v633
        %v681 = vadd.f32 %v555, %v636
        %v682 = vadd.f32 %v556, %v638
        %v683 = vadd.f32 %v557, %v641
        %v684 = vadd.f32 %v558, %v643
        %v685 = vadd.f32 %v559, %v646
        %v686 = vadd.f32 %v560, %v648
        %v687 = vadd.f32 %v561, %v651
        %v688 = vadd.f32 %v562, %v653
        %v689 = vadd.f32 %v563, %v656
        %v690 = vadd.f32 %v564, %v658
        %s691 = sadd.s32 %s375, 1
        %s692 = smul.u32 %s691, 32
        %s693 = scalar_lea.vmem [#allocation2], %s692
        %v694 = vld [vmem:[%s693 + $0x7] sm:$0xff]
        %v695 = vld [vmem:[%s693 + $0xf] sm:$0xff]
        %v696 = vld [vmem:[%s693 + $0x17] sm:$0x3]
        %v697 = vld [vmem:[%s693 + $0x27] sm:$0xff]
        %v698 = vld [vmem:[%s693 + $0x2f] sm:$0xff]
        %v699 = vld [vmem:[%s693 + $0x37] sm:$0x3]
        %v700 = vld [vmem:[%s693 + $0x47] sm:$0xff]
        %v701 = vld [vmem:[%s693 + $0x4f] sm:$0xff]
        %v702 = vld [vmem:[%s693 + $0x57] sm:$0x3]
        %v703 = vld [vmem:[%s693 + $0x67] sm:$0xff]
        %v704 = vld [vmem:[%s693 + $0x6f] sm:$0xff]
        %v705 = vld [vmem:[%s693 + $0x77] sm:$0x3]
        %v706 = vld [vmem:[%s693 + $0x87] sm:$0xff]
        %v707 = vld [vmem:[%s693 + $0x8f] sm:$0xff]
        %v708 = vld [vmem:[%s693 + $0x97] sm:$0x3]
        %v709 = vld [vmem:[%s693 + $0xa7] sm:$0xff]
        %v710 = vld [vmem:[%s693 + $0xaf] sm:$0xff]
        %v711 = vld [vmem:[%s693 + $0xb7] sm:$0x3]
        %v712 = vld [vmem:[%s693 + $0xc7] sm:$0xff]
        %v713 = vld [vmem:[%s693 + $0xcf] sm:$0xff]
        %v714 = vld [vmem:[%s693 + $0xd7] sm:$0x3]
        %v715 = vld [vmem:[%s693 + $0xe7] sm:$0xff]
        %v716 = vld [vmem:[%s693 + $0xef] sm:$0xff]
        %v717 = vld [vmem:[%s693 + $0xf7] sm:$0x3]
        %v718 = vld [vmem:[#allocation6 + $0x3] sm:$0x1]
        %v719 = vlaneseq
        %v720 = vshrl.u32 %v719, 7
        %v721 = vsub.s32 0, %v720
        %v722 = vrot.slane %v718, %v721
        %v723 = vmul.f32 %v722, %v694
        %v724 = vmul.f32 %v722, %v695
        %v725 = vmul.f32 %v722, %v697
        %v726 = vmul.f32 %v722, %v698
        %v727 = vmul.f32 %v722, %v700
        %v728 = vmul.f32 %v722, %v701
        %v729 = vmul.f32 %v722, %v703
        %v730 = vmul.f32 %v722, %v704
        %v731 = vmul.f32 %v722, %v706
        %v732 = vmul.f32 %v722, %v707
        %v733 = vmul.f32 %v722, %v709
        %v734 = vmul.f32 %v722, %v710
        %v735 = vmul.f32 %v722, %v712
        %v736 = vmul.f32 %v722, %v713
        %v737 = vmul.f32 %v722, %v715
        %v738 = vmul.f32 %v722, %v716
        %v739 = vadd.f32 %v675, %v723
        %v740 = vadd.f32 %v676, %v724
        %v741 = vadd.f32 %v677, %v725
        %v742 = vadd.f32 %v678, %v726
        %v743 = vadd.f32 %v679, %v727
        %v744 = vadd.f32 %v680, %v728
        %v745 = vadd.f32 %v681, %v729
        %v746 = vadd.f32 %v682, %v730
        %v747 = vadd.f32 %v683, %v731
        %v748 = vadd.f32 %v684, %v732
        %v749 = vadd.f32 %v685, %v733
        %v750 = vadd.f32 %v686, %v734
        %v751 = vadd.f32 %v687, %v735
        %v752 = vadd.f32 %v688, %v736
        %v753 = vadd.f32 %v689, %v737
        %v754 = vadd.f32 %v690, %v738
        %v755 = vld [vmem:[#allocation6 + $0x4] sm:$0x1]
        %v756 = vlaneseq
        %v757 = vshrl.u32 %v756, 7
        %v758 = vsub.s32 0, %v757
        %v759 = vrot.slane %v755, %v758
        %v760 = vmul.f32 %v759, %v694
        %v761 = vmul.f32 %v759, %v695
        %v762 = vmul.f32 %v759, %v696
        %v763 = vmul.f32 %v759, %v697
        %v764 = vmul.f32 %v759, %v698
        %v765 = vmul.f32 %v759, %v699
        %v766 = vmul.f32 %v759, %v700
        %v767 = vmul.f32 %v759, %v701
        %v768 = vmul.f32 %v759, %v702
        %v769 = vmul.f32 %v759, %v703
        %v770 = vmul.f32 %v759, %v704
        %v771 = vmul.f32 %v759, %v705
        %v772 = vmul.f32 %v759, %v706
        %v773 = vmul.f32 %v759, %v707
        %v774 = vmul.f32 %v759, %v708
        %v775 = vmul.f32 %v759, %v709
        %v776 = vmul.f32 %v759, %v710
        %v777 = vmul.f32 %v759, %v711
        %v778 = vmul.f32 %v759, %v712
        %v779 = vmul.f32 %v759, %v713
        %v780 = vmul.f32 %v759, %v714
        %v781 = vmul.f32 %v759, %v715
        %v782 = vmul.f32 %v759, %v716
        %v783 = vmul.f32 %v759, %v717
        %v808 = vrot.slane %v760, 1
        %v809 = vrot.slane %v761, 1
        %v810 = vsel %vm492, %v808, %v809
        %v811 = vrot.slane %v762, 1
        %v812 = vsel %vm492, %v809, %v811
        %v813 = vrot.slane %v763, 1
        %v814 = vrot.slane %v764, 1
        %v815 = vsel %vm492, %v813, %v814
        %v816 = vrot.slane %v765, 1
        %v817 = vsel %vm492, %v814, %v816
        %v818 = vrot.slane %v766, 1
        %v819 = vrot.slane %v767, 1
        %v820 = vsel %vm492, %v818, %v819
        %v821 = vrot.slane %v768, 1
        %v822 = vsel %vm492, %v819, %v821
        %v823 = vrot.slane %v769, 1
        %v824 = vrot.slane %v770, 1
        %v825 = vsel %vm492, %v823, %v824
        %v826 = vrot.slane %v771, 1
        %v827 = vsel %vm492, %v824, %v826
        %v828 = vrot.slane %v772, 1
        %v829 = vrot.slane %v773, 1
        %v830 = vsel %vm492, %v828, %v829
        %v831 = vrot.slane %v774, 1
        %v832 = vsel %vm492, %v829, %v831
        %v833 = vrot.slane %v775, 1
        %v834 = vrot.slane %v776, 1
        %v835 = vsel %vm492, %v833, %v834
        %v836 = vrot.slane %v777, 1
        %v837 = vsel %vm492, %v834, %v836
        %v838 = vrot.slane %v778, 1
        %v839 = vrot.slane %v779, 1
        %v840 = vsel %vm492, %v838, %v839
        %v841 = vrot.slane %v780, 1
        %v842 = vsel %vm492, %v839, %v841
        %v843 = vrot.slane %v781, 1
        %v844 = vrot.slane %v782, 1
        %v845 = vsel %vm492, %v843, %v844
        %v846 = vrot.slane %v783, 1
        %v847 = vsel %vm492, %v844, %v846
        %v864 = vadd.f32 %v739, %v810
        %v865 = vadd.f32 %v740, %v812
        %v866 = vadd.f32 %v741, %v815
        %v867 = vadd.f32 %v742, %v817
        %v868 = vadd.f32 %v743, %v820
        %v869 = vadd.f32 %v744, %v822
        %v870 = vadd.f32 %v745, %v825
        %v871 = vadd.f32 %v746, %v827
        %v872 = vadd.f32 %v747, %v830
        %v873 = vadd.f32 %v748, %v832
        %v874 = vadd.f32 %v749, %v835
        %v875 = vadd.f32 %v750, %v837
        %v876 = vadd.f32 %v751, %v840
        %v877 = vadd.f32 %v752, %v842
        %v878 = vadd.f32 %v753, %v845
        %v879 = vadd.f32 %v754, %v847
        %v880 = vld [vmem:[#allocation6 + $0x5] sm:$0x1]
        %v881 = vlaneseq
        %v882 = vshrl.u32 %v881, 7
        %v883 = vsub.s32 0, %v882
        %v884 = vrot.slane %v880, %v883
        %v885 = vmul.f32 %v884, %v694
        %v886 = vmul.f32 %v884, %v695
        %v887 = vmul.f32 %v884, %v696
        %v888 = vmul.f32 %v884, %v697
        %v889 = vmul.f32 %v884, %v698
        %v890 = vmul.f32 %v884, %v699
        %v891 = vmul.f32 %v884, %v700
        %v892 = vmul.f32 %v884, %v701
        %v893 = vmul.f32 %v884, %v702
        %v894 = vmul.f32 %v884, %v703
        %v895 = vmul.f32 %v884, %v704
        %v896 = vmul.f32 %v884, %v705
        %v897 = vmul.f32 %v884, %v706
        %v898 = vmul.f32 %v884, %v707
        %v899 = vmul.f32 %v884, %v708
        %v900 = vmul.f32 %v884, %v709
        %v901 = vmul.f32 %v884, %v710
        %v902 = vmul.f32 %v884, %v711
        %v903 = vmul.f32 %v884, %v712
        %v904 = vmul.f32 %v884, %v713
        %v905 = vmul.f32 %v884, %v714
        %v906 = vmul.f32 %v884, %v715
        %v907 = vmul.f32 %v884, %v716
        %v908 = vmul.f32 %v884, %v717
        %v933 = vrot.slane %v885, 2
        %v934 = vrot.slane %v886, 2
        %v935 = vsel %vm618, %v933, %v934
        %v936 = vrot.slane %v887, 2
        %v937 = vsel %vm618, %v934, %v936
        %v938 = vrot.slane %v888, 2
        %v939 = vrot.slane %v889, 2
        %v940 = vsel %vm618, %v938, %v939
        %v941 = vrot.slane %v890, 2
        %v942 = vsel %vm618, %v939, %v941
        %v943 = vrot.slane %v891, 2
        %v944 = vrot.slane %v892, 2
        %v945 = vsel %vm618, %v943, %v944
        %v946 = vrot.slane %v893, 2
        %v947 = vsel %vm618, %v944, %v946
        %v948 = vrot.slane %v894, 2
        %v949 = vrot.slane %v895, 2
        %v950 = vsel %vm618, %v948, %v949
        %v951 = vrot.slane %v896, 2
        %v952 = vsel %vm618, %v949, %v951
        %v953 = vrot.slane %v897, 2
        %v954 = vrot.slane %v898, 2
        %v955 = vsel %vm618, %v953, %v954
        %v956 = vrot.slane %v899, 2
        %v957 = vsel %vm618, %v954, %v956
        %v958 = vrot.slane %v900, 2
        %v959 = vrot.slane %v901, 2
        %v960 = vsel %vm618, %v958, %v959
        %v961 = vrot.slane %v902, 2
        %v962 = vsel %vm618, %v959, %v961
        %v963 = vrot.slane %v903, 2
        %v964 = vrot.slane %v904, 2
        %v965 = vsel %vm618, %v963, %v964
        %v966 = vrot.slane %v905, 2
        %v967 = vsel %vm618, %v964, %v966
        %v968 = vrot.slane %v906, 2
        %v969 = vrot.slane %v907, 2
        %v970 = vsel %vm618, %v968, %v969
        %v971 = vrot.slane %v908, 2
        %v972 = vsel %vm618, %v969, %v971
        %v989 = vadd.f32 %v864, %v935
        %v990 = vadd.f32 %v865, %v937
        %v991 = vadd.f32 %v866, %v940
        %v992 = vadd.f32 %v867, %v942
        %v993 = vadd.f32 %v868, %v945
        %v994 = vadd.f32 %v869, %v947
        %v995 = vadd.f32 %v870, %v950
        %v996 = vadd.f32 %v871, %v952
        %v997 = vadd.f32 %v872, %v955
        %v998 = vadd.f32 %v873, %v957
        %v999 = vadd.f32 %v874, %v960
        %v1000 = vadd.f32 %v875, %v962
        %v1001 = vadd.f32 %v876, %v965
        %v1002 = vadd.f32 %v877, %v967
        %v1003 = vadd.f32 %v878, %v970
        %v1004 = vadd.f32 %v879, %v972
        %s1005 = sadd.s32 %s375, 2
        %s1006 = smul.u32 %s1005, 32
        %s1007 = scalar_lea.vmem [#allocation2], %s1006
        %v1008 = vld [vmem:[%s1007 + $0x7] sm:$0xff]
        %v1009 = vld [vmem:[%s1007 + $0xf] sm:$0xff]
        %v1010 = vld [vmem:[%s1007 + $0x17] sm:$0x3]
        %v1011 = vld [vmem:[%s1007 + $0x27] sm:$0xff]
        %v1012 = vld [vmem:[%s1007 + $0x2f] sm:$0xff]
        %v1013 = vld [vmem:[%s1007 + $0x37] sm:$0x3]
        %v1014 = vld [vmem:[%s1007 + $0x47] sm:$0xff]
        %v1015 = vld [vmem:[%s1007 + $0x4f] sm:$0xff]
        %v1016 = vld [vmem:[%s1007 + $0x57] sm:$0x3]
        %v1017 = vld [vmem:[%s1007 + $0x67] sm:$0xff]
        %v1018 = vld [vmem:[%s1007 + $0x6f] sm:$0xff]
        %v1019 = vld [vmem:[%s1007 + $0x77] sm:$0x3]
        %v1020 = vld [vmem:[%s1007 + $0x87] sm:$0xff]
        %v1021 = vld [vmem:[%s1007 + $0x8f] sm:$0xff]
        %v1022 = vld [vmem:[%s1007 + $0x97] sm:$0x3]
        %v1023 = vld [vmem:[%s1007 + $0xa7] sm:$0xff]
        %v1024 = vld [vmem:[%s1007 + $0xaf] sm:$0xff]
        %v1025 = vld [vmem:[%s1007 + $0xb7] sm:$0x3]
        %v1026 = vld [vmem:[%s1007 + $0xc7] sm:$0xff]
        %v1027 = vld [vmem:[%s1007 + $0xcf] sm:$0xff]
        %v1028 = vld [vmem:[%s1007 + $0xd7] sm:$0x3]
        %v1029 = vld [vmem:[%s1007 + $0xe7] sm:$0xff]
        %v1030 = vld [vmem:[%s1007 + $0xef] sm:$0xff]
        %v1031 = vld [vmem:[%s1007 + $0xf7] sm:$0x3]
        %v1032 = vld [vmem:[#allocation6 + $0x6] sm:$0x1]
        %v1033 = vlaneseq
        %v1034 = vshrl.u32 %v1033, 7
        %v1035 = vsub.s32 0, %v1034
        %v1036 = vrot.slane %v1032, %v1035
        %v1037 = vmul.f32 %v1036, %v1008
        %v1038 = vmul.f32 %v1036, %v1009
        %v1039 = vmul.f32 %v1036, %v1011
        %v1040 = vmul.f32 %v1036, %v1012
        %v1041 = vmul.f32 %v1036, %v1014
        %v1042 = vmul.f32 %v1036, %v1015
        %v1043 = vmul.f32 %v1036, %v1017
        %v1044 = vmul.f32 %v1036, %v1018
        %v1045 = vmul.f32 %v1036, %v1020
        %v1046 = vmul.f32 %v1036, %v1021
        %v1047 = vmul.f32 %v1036, %v1023
        %v1048 = vmul.f32 %v1036, %v1024
        %v1049 = vmul.f32 %v1036, %v1026
        %v1050 = vmul.f32 %v1036, %v1027
        %v1051 = vmul.f32 %v1036, %v1029
        %v1052 = vmul.f32 %v1036, %v1030
        %v1053 = vadd.f32 %v989, %v1037
        %v1054 = vadd.f32 %v990, %v1038
        %v1055 = vadd.f32 %v991, %v1039
        %v1056 = vadd.f32 %v992, %v1040
        %v1057 = vadd.f32 %v993, %v1041
        %v1058 = vadd.f32 %v994, %v1042
        %v1059 = vadd.f32 %v995, %v1043
        %v1060 = vadd.f32 %v996, %v1044
        %v1061 = vadd.f32 %v997, %v1045
        %v1062 = vadd.f32 %v998, %v1046
        %v1063 = vadd.f32 %v999, %v1047
        %v1064 = vadd.f32 %v1000, %v1048
        %v1065 = vadd.f32 %v1001, %v1049
        %v1066 = vadd.f32 %v1002, %v1050
        %v1067 = vadd.f32 %v1003, %v1051
        %v1068 = vadd.f32 %v1004, %v1052
        %v1069 = vld [vmem:[#allocation6 + $0x7] sm:$0x1]
        %v1070 = vlaneseq
        %v1071 = vshrl.u32 %v1070, 7
        %v1072 = vsub.s32 0, %v1071
        %v1073 = vrot.slane %v1069, %v1072
        %v1074 = vmul.f32 %v1073, %v1008
        %v1075 = vmul.f32 %v1073, %v1009
        %v1076 = vmul.f32 %v1073, %v1010
        %v1077 = vmul.f32 %v1073, %v1011
        %v1078 = vmul.f32 %v1073, %v1012
        %v1079 = vmul.f32 %v1073, %v1013
        %v1080 = vmul.f32 %v1073, %v1014
        %v1081 = vmul.f32 %v1073, %v1015
        %v1082 = vmul.f32 %v1073, %v1016
        %v1083 = vmul.f32 %v1073, %v1017
        %v1084 = vmul.f32 %v1073, %v1018
        %v1085 = vmul.f32 %v1073, %v1019
        %v1086 = vmul.f32 %v1073, %v1020
        %v1087 = vmul.f32 %v1073, %v1021
        %v1088 = vmul.f32 %v1073, %v1022
        %v1089 = vmul.f32 %v1073, %v1023
        %v1090 = vmul.f32 %v1073, %v1024
        %v1091 = vmul.f32 %v1073, %v1025
        %v1092 = vmul.f32 %v1073, %v1026
        %v1093 = vmul.f32 %v1073, %v1027
        %v1094 = vmul.f32 %v1073, %v1028
        %v1095 = vmul.f32 %v1073, %v1029
        %v1096 = vmul.f32 %v1073, %v1030
        %v1097 = vmul.f32 %v1073, %v1031
        %v1122 = vrot.slane %v1074, 1
        %v1123 = vrot.slane %v1075, 1
        %v1124 = vsel %vm492, %v1122, %v1123
        %v1125 = vrot.slane %v1076, 1
        %v1126 = vsel %vm492, %v1123, %v1125
        %v1127 = vrot.slane %v1077, 1
        %v1128 = vrot.slane %v1078, 1
        %v1129 = vsel %vm492, %v1127, %v1128
        %v1130 = vrot.slane %v1079, 1
        %v1131 = vsel %vm492, %v1128, %v1130
        %v1132 = vrot.slane %v1080, 1
        %v1133 = vrot.slane %v1081, 1
        %v1134 = vsel %vm492, %v1132, %v1133
        %v1135 = vrot.slane %v1082, 1
        %v1136 = vsel %vm492, %v1133, %v1135
        %v1137 = vrot.slane %v1083, 1
        %v1138 = vrot.slane %v1084, 1
        %v1139 = vsel %vm492, %v1137, %v1138
        %v1140 = vrot.slane %v1085, 1
        %v1141 = vsel %vm492, %v1138, %v1140
        %v1142 = vrot.slane %v1086, 1
        %v1143 = vrot.slane %v1087, 1
        %v1144 = vsel %vm492, %v1142, %v1143
        %v1145 = vrot.slane %v1088, 1
        %v1146 = vsel %vm492, %v1143, %v1145
        %v1147 = vrot.slane %v1089, 1
        %v1148 = vrot.slane %v1090, 1
        %v1149 = vsel %vm492, %v1147, %v1148
        %v1150 = vrot.slane %v1091, 1
        %v1151 = vsel %vm492, %v1148, %v1150
        %v1152 = vrot.slane %v1092, 1
        %v1153 = vrot.slane %v1093, 1
        %v1154 = vsel %vm492, %v1152, %v1153
        %v1155 = vrot.slane %v1094, 1
        %v1156 = vsel %vm492, %v1153, %v1155
        %v1157 = vrot.slane %v1095, 1
        %v1158 = vrot.slane %v1096, 1
        %v1159 = vsel %vm492, %v1157, %v1158
        %v1160 = vrot.slane %v1097, 1
        %v1161 = vsel %vm492, %v1158, %v1160
        %v1178 = vadd.f32 %v1053, %v1124
        %v1179 = vadd.f32 %v1054, %v1126
        %v1180 = vadd.f32 %v1055, %v1129
        %v1181 = vadd.f32 %v1056, %v1131
        %v1182 = vadd.f32 %v1057, %v1134
        %v1183 = vadd.f32 %v1058, %v1136
        %v1184 = vadd.f32 %v1059, %v1139
        %v1185 = vadd.f32 %v1060, %v1141
        %v1186 = vadd.f32 %v1061, %v1144
        %v1187 = vadd.f32 %v1062, %v1146
        %v1188 = vadd.f32 %v1063, %v1149
        %v1189 = vadd.f32 %v1064, %v1151
        %v1190 = vadd.f32 %v1065, %v1154
        %v1191 = vadd.f32 %v1066, %v1156
        %v1192 = vadd.f32 %v1067, %v1159
        %v1193 = vadd.f32 %v1068, %v1161
        %v1194 = vld [vmem:[#allocation6 + $0x8] sm:$0x1]
        %v1195 = vlaneseq
        %v1196 = vshrl.u32 %v1195, 7
        %v1197 = vsub.s32 0, %v1196
        %v1198 = vrot.slane %v1194, %v1197
        %v1199 = vmul.f32 %v1198, %v1008
        %v1200 = vmul.f32 %v1198, %v1009
        %v1201 = vmul.f32 %v1198, %v1010
        %v1202 = vmul.f32 %v1198, %v1011
        %v1203 = vmul.f32 %v1198, %v1012
        %v1204 = vmul.f32 %v1198, %v1013
        %v1205 = vmul.f32 %v1198, %v1014
        %v1206 = vmul.f32 %v1198, %v1015
        %v1207 = vmul.f32 %v1198, %v1016
        %v1208 = vmul.f32 %v1198, %v1017
        %v1209 = vmul.f32 %v1198, %v1018
        %v1210 = vmul.f32 %v1198, %v1019
        %v1211 = vmul.f32 %v1198, %v1020
        %v1212 = vmul.f32 %v1198, %v1021
        %v1213 = vmul.f32 %v1198, %v1022
        %v1214 = vmul.f32 %v1198, %v1023
        %v1215 = vmul.f32 %v1198, %v1024
        %v1216 = vmul.f32 %v1198, %v1025
        %v1217 = vmul.f32 %v1198, %v1026
        %v1218 = vmul.f32 %v1198, %v1027
        %v1219 = vmul.f32 %v1198, %v1028
        %v1220 = vmul.f32 %v1198, %v1029
        %v1221 = vmul.f32 %v1198, %v1030
        %v1222 = vmul.f32 %v1198, %v1031
        %v1247 = vrot.slane %v1199, 2
        %v1248 = vrot.slane %v1200, 2
        %v1249 = vsel %vm618, %v1247, %v1248
        %v1250 = vrot.slane %v1201, 2
        %v1251 = vsel %vm618, %v1248, %v1250
        %v1252 = vrot.slane %v1202, 2
        %v1253 = vrot.slane %v1203, 2
        %v1254 = vsel %vm618, %v1252, %v1253
        %v1255 = vrot.slane %v1204, 2
        %v1256 = vsel %vm618, %v1253, %v1255
        %v1257 = vrot.slane %v1205, 2
        %v1258 = vrot.slane %v1206, 2
        %v1259 = vsel %vm618, %v1257, %v1258
        %v1260 = vrot.slane %v1207, 2
        %v1261 = vsel %vm618, %v1258, %v1260
        %v1262 = vrot.slane %v1208, 2
        %v1263 = vrot.slane %v1209, 2
        %v1264 = vsel %vm618, %v1262, %v1263
        %v1265 = vrot.slane %v1210, 2
        %v1266 = vsel %vm618, %v1263, %v1265
        %v1267 = vrot.slane %v1211, 2
        %v1268 = vrot.slane %v1212, 2
        %v1269 = vsel %vm618, %v1267, %v1268
        %v1270 = vrot.slane %v1213, 2
        %v1271 = vsel %vm618, %v1268, %v1270
        %v1272 = vrot.slane %v1214, 2
        %v1273 = vrot.slane %v1215, 2
        %v1274 = vsel %vm618, %v1272, %v1273
        %v1275 = vrot.slane %v1216, 2
        %v1276 = vsel %vm618, %v1273, %v1275
        %v1277 = vrot.slane %v1217, 2
        %v1278 = vrot.slane %v1218, 2
        %v1279 = vsel %vm618, %v1277, %v1278
        %v1280 = vrot.slane %v1219, 2
        %v1281 = vsel %vm618, %v1278, %v1280
        %v1282 = vrot.slane %v1220, 2
        %v1283 = vrot.slane %v1221, 2
        %v1284 = vsel %vm618, %v1282, %v1283
        %v1285 = vrot.slane %v1222, 2
        %v1286 = vsel %vm618, %v1283, %v1285
        %v1303 = vadd.f32 %v1178, %v1249
        %v1304 = vadd.f32 %v1179, %v1251
        %v1305 = vadd.f32 %v1180, %v1254
        %v1306 = vadd.f32 %v1181, %v1256
        %v1307 = vadd.f32 %v1182, %v1259
        %v1308 = vadd.f32 %v1183, %v1261
        %v1309 = vadd.f32 %v1184, %v1264
        %v1310 = vadd.f32 %v1185, %v1266
        %v1311 = vadd.f32 %v1186, %v1269
        %v1312 = vadd.f32 %v1187, %v1271
        %v1313 = vadd.f32 %v1188, %v1274
        %v1314 = vadd.f32 %v1189, %v1276
        %v1315 = vadd.f32 %v1190, %v1279
        %v1316 = vadd.f32 %v1191, %v1281
        %v1317 = vadd.f32 %v1192, %v1284
        %v1318 = vadd.f32 %v1193, %v1286
        %v1319 = vpack.c.bf16 %v1304, %v1303
        %v1320 = vpack.c.bf16 %v1306, %v1305
        %v1321 = vpack.c.bf16 %v1308, %v1307
        %v1322 = vpack.c.bf16 %v1310, %v1309
        %v1323 = vpack.c.bf16 %v1312, %v1311
        %v1324 = vpack.c.bf16 %v1314, %v1313
        %v1325 = vpack.c.bf16 %v1316, %v1315
        %v1326 = vpack.c.bf16 %v1318, %v1317
        %v1327 = vld [vmem:[#allocation8] sm:$0xf]
        %v1328 = vld [vmem:[#allocation8 + $0x4] sm:$0xf]
        %v1329 = vld [vmem:[#allocation8 + $0x8] sm:$0xf]
        %v1330 = vld [vmem:[#allocation8 + $0xc] sm:$0xf]
        %v1331 = vld [vmem:[#allocation8 + $0x10] sm:$0xf]
        %v1332 = vld [vmem:[#allocation8 + $0x14] sm:$0xf]
        %v1333 = vld [vmem:[#allocation8 + $0x18] sm:$0xf]
        %v1334 = vld [vmem:[#allocation8 + $0x1c] sm:$0xf]
        %v1335 = vld [vmem:[#allocation8 + $0x20] sm:$0xf]
        %v1336 = vld [vmem:[#allocation8 + $0x24] sm:$0xf]
        %v1337 = vld [vmem:[#allocation8 + $0x28] sm:$0xf]
        %v1338 = vld [vmem:[#allocation8 + $0x2c] sm:$0xf]
        %v1339 = vld [vmem:[#allocation8 + $0x30] sm:$0xf]
        %v1340 = vld [vmem:[#allocation8 + $0x34] sm:$0xf]
        %v1341 = vld [vmem:[#allocation8 + $0x38] sm:$0xf]
        %v1342 = vld [vmem:[#allocation8 + $0x3c] sm:$0xf]
        %v1343 = vld [vmem:[%s3] sm:$0x1]
        %v1345 = vlaneseq
        %v1346 = vshrl.u32 %v1345, 7
        %v1347 = vsub.s32 0, %v1346
        %v1348 = vrot.slane %v1343, %v1347
        %v1366 = vunpack.c.l.b16 %v1327
        %v1367 = vunpack.c.l.b16 %v1328
        %v1368 = vunpack.c.l.b16 %v1329
        %v1369 = vunpack.c.l.b16 %v1330
        %v1370 = vunpack.c.l.b16 %v1331
        %v1371 = vunpack.c.l.b16 %v1332
        %v1372 = vunpack.c.l.b16 %v1333
        %v1373 = vunpack.c.l.b16 %v1334
        %v1374 = vunpack.c.l.b16 %v1335
        %v1375 = vunpack.c.l.b16 %v1336
        %v1376 = vunpack.c.l.b16 %v1337
        %v1377 = vunpack.c.l.b16 %v1338
        %v1378 = vunpack.c.l.b16 %v1339
        %v1379 = vunpack.c.l.b16 %v1340
        %v1380 = vunpack.c.l.b16 %v1341
        %v1381 = vunpack.c.l.b16 %v1342
        %v1382 = vpack.c.b16 %v1367, %v1366
        %v1383 = vpack.c.b16 %v1369, %v1368
        %v1384 = vpack.c.b16 %v1371, %v1370
        %v1385 = vpack.c.b16 %v1373, %v1372
        %v1386 = vpack.c.b16 %v1375, %v1374
        %v1387 = vpack.c.b16 %v1377, %v1376
        %v1388 = vpack.c.b16 %v1379, %v1378
        %v1389 = vpack.c.b16 %v1381, %v1380
        %1398 = vmatprep.subr.bf16.mxu0 0
        %1399 = vmatpush1.bf16.msra.mxu0 %v1389
        %1400 = vmatprep.subr.bf16.mxu0 0
        %1401 = vmatpush1.bf16.msra.mxu0 %v1388
        %1402 = vmatprep.subr.bf16.mxu0 0
        %1403 = vmatpush1.bf16.msra.mxu0 %v1387
        %1404 = vmatprep.subr.bf16.mxu0 0
        %1405 = vmatpush1.bf16.msra.mxu0 %v1386
        %1406 = vmatprep.subr.bf16.mxu0 0
        %1407 = vmatpush1.bf16.msra.mxu0 %v1385
        %1408 = vmatprep.subr.bf16.mxu0 0
        %1409 = vmatpush1.bf16.msra.mxu0 %v1384
        %1410 = vmatprep.subr.bf16.mxu0 0
        %1411 = vmatpush1.bf16.msra.mxu0 %v1383
        %1412 = vmatprep.subr.bf16.mxu0 0
        %1413 = vmatpush1.bf16.msra.mxu0 %v1382
        %1414 = vmatprep.subr.bf16.mxu0 0
        %1415 = vmatpush2.bf16.msra.mxu0 0
        %1416 = vmatprep.subr.bf16.mxu0 0
        %1417 = vmatpush2.bf16.msra.mxu0 0
        %1418 = vmatprep.subr.bf16.mxu0 0
        %1419 = vmatpush2.bf16.msra.mxu0 0
        %1420 = vmatprep.subr.bf16.mxu0 0
        %1421 = vmatpush2.bf16.msra.mxu0 0
        %1422 = vmatprep.subr.bf16.mxu0 0
        %1423 = vmatpush2.bf16.msra.mxu0 0
        %1424 = vmatprep.subr.bf16.mxu0 0
        %1425 = vmatpush2.bf16.msra.mxu0 0
        %1426 = vmatprep.subr.bf16.mxu0 0
        %1427 = vmatpush2.bf16.msra.mxu0 0
        %1428 = vmatprep.subr.bf16.mxu0 0
        %1429 = vmatpush2.bf16.msra.mxu0 0
        %1430 = vmatprep.mubr.bf16.mxu0 0
        %1431 = vmatmul.mubr.bf16.gmra.mxu0 %v1319
        %v1432 = vpop.f32.mrf.mxu0
        %v1433 = vadd.f32 %v1348, %v1432
        %v1434 = vpop.f32.mrf.mxu0
        %v1435 = vpop.f32.mrf.mxu0
        %v1436 = vadd.f32 %v1348, %v1435
        %v1437 = vpop.f32.mrf.mxu0
        %1438 = vmatprep.mubr.bf16.mxu0 0
        %1439 = vmatmul.mubr.bf16.gmra.mxu0 %v1320
        %v1440 = vpop.f32.mrf.mxu0
        %v1441 = vadd.f32 %v1348, %v1440
        %v1442 = vpop.f32.mrf.mxu0
        %v1443 = vpop.f32.mrf.mxu0
        %v1444 = vadd.f32 %v1348, %v1443
        %v1445 = vpop.f32.mrf.mxu0
        %1446 = vmatprep.mubr.bf16.mxu0 0
        %1447 = vmatmul.mubr.bf16.gmra.mxu0 %v1321
        %v1448 = vpop.f32.mrf.mxu0
        %v1449 = vadd.f32 %v1348, %v1448
        %v1450 = vpop.f32.mrf.mxu0
        %v1451 = vpop.f32.mrf.mxu0
        %v1452 = vadd.f32 %v1348, %v1451
        %v1453 = vpop.f32.mrf.mxu0
        %1454 = vmatprep.mubr.bf16.mxu0 0
        %1455 = vmatmul.mubr.bf16.gmra.mxu0 %v1322
        %v1456 = vpop.f32.mrf.mxu0
        %v1457 = vadd.f32 %v1348, %v1456
        %v1458 = vpop.f32.mrf.mxu0
        %v1459 = vpop.f32.mrf.mxu0
        %v1460 = vadd.f32 %v1348, %v1459
        %v1461 = vpop.f32.mrf.mxu0
        %1462 = vmatprep.mubr.bf16.mxu0 0
        %1463 = vmatmul.mubr.bf16.gmra.mxu0 %v1323
        %v1464 = vpop.f32.mrf.mxu0
        %v1465 = vadd.f32 %v1348, %v1464
        %v1466 = vpop.f32.mrf.mxu0
        %v1467 = vpop.f32.mrf.mxu0
        %v1468 = vadd.f32 %v1348, %v1467
        %v1469 = vpop.f32.mrf.mxu0
        %1470 = vmatprep.mubr.bf16.mxu0 0
        %1471 = vmatmul.mubr.bf16.gmra.mxu0 %v1324
        %v1472 = vpop.f32.mrf.mxu0
        %v1473 = vadd.f32 %v1348, %v1472
        %v1474 = vpop.f32.mrf.mxu0
        %v1475 = vpop.f32.mrf.mxu0
        %v1476 = vadd.f32 %v1348, %v1475
        %v1477 = vpop.f32.mrf.mxu0
        %1478 = vmatprep.mubr.bf16.mxu0 0
        %1479 = vmatmul.mubr.bf16.gmra.mxu0 %v1325
        %v1480 = vpop.f32.mrf.mxu0
        %v1481 = vadd.f32 %v1348, %v1480
        %v1482 = vpop.f32.mrf.mxu0
        %v1483 = vpop.f32.mrf.mxu0
        %v1484 = vadd.f32 %v1348, %v1483
        %v1485 = vpop.f32.mrf.mxu0
        %1486 = vmatprep.mubr.bf16.mxu0 0
        %1487 = vmatmul.mubr.bf16.gmra.mxu0 %v1326
        %v1488 = vpop.f32.mrf.mxu0
        %v1489 = vadd.f32 %v1348, %v1488
        %v1490 = vpop.f32.mrf.mxu0
        %v1491 = vpop.f32.mrf.mxu0
        %v1492 = vadd.f32 %v1348, %v1491
        %v1493 = vpop.f32.mrf.mxu0
        %1494 = vdwg.mxu0
        %v1495 = vadd.f32 %v1433, 3.0
        %v1496 = vadd.f32 %v1436, 3.0
        %v1497 = vadd.f32 %v1441, 3.0
        %v1498 = vadd.f32 %v1444, 3.0
        %v1499 = vadd.f32 %v1449, 3.0
        %v1500 = vadd.f32 %v1452, 3.0
        %v1501 = vadd.f32 %v1457, 3.0
        %v1502 = vadd.f32 %v1460, 3.0
        %v1503 = vadd.f32 %v1465, 3.0
        %v1504 = vadd.f32 %v1468, 3.0
        %v1505 = vadd.f32 %v1473, 3.0
        %v1506 = vadd.f32 %v1476, 3.0
        %v1507 = vadd.f32 %v1481, 3.0
        %v1508 = vadd.f32 %v1484, 3.0
        %v1509 = vadd.f32 %v1489, 3.0
        %v1510 = vadd.f32 %v1492, 3.0
        %v1511 = vmax.f32 %v1495, 0.0
        %v1512 = vmax.f32 %v1496, 0.0
        %v1513 = vmax.f32 %v1497, 0.0
        %v1514 = vmax.f32 %v1498, 0.0
        %v1515 = vmax.f32 %v1499, 0.0
        %v1516 = vmax.f32 %v1500, 0.0
        %v1517 = vmax.f32 %v1501, 0.0
        %v1518 = vmax.f32 %v1502, 0.0
        %v1519 = vmax.f32 %v1503, 0.0
        %v1520 = vmax.f32 %v1504, 0.0
        %v1521 = vmax.f32 %v1505, 0.0
        %v1522 = vmax.f32 %v1506, 0.0
        %v1523 = vmax.f32 %v1507, 0.0
        %v1524 = vmax.f32 %v1508, 0.0
        %v1525 = vmax.f32 %v1509, 0.0
        %v1526 = vmax.f32 %v1510, 0.0
        %v1527 = vmin.f32 %v1511, 6.0
        %v1528 = vmin.f32 %v1512, 6.0
        %v1529 = vmin.f32 %v1513, 6.0
        %v1530 = vmin.f32 %v1514, 6.0
        %v1531 = vmin.f32 %v1515, 6.0
        %v1532 = vmin.f32 %v1516, 6.0
        %v1533 = vmin.f32 %v1517, 6.0
        %v1534 = vmin.f32 %v1518, 6.0
        %v1535 = vmin.f32 %v1519, 6.0
        %v1536 = vmin.f32 %v1520, 6.0
        %v1537 = vmin.f32 %v1521, 6.0
        %v1538 = vmin.f32 %v1522, 6.0
        %v1539 = vmin.f32 %v1523, 6.0
        %v1540 = vmin.f32 %v1524, 6.0
        %v1541 = vmin.f32 %v1525, 6.0
        %v1542 = vmin.f32 %v1526, 6.0
        %v1543 = vmul.f32 %v1433, %v1527
        %v1544 = vmul.f32 %v1436, %v1528
        %v1545 = vmul.f32 %v1441, %v1529
        %v1546 = vmul.f32 %v1444, %v1530
        %v1547 = vmul.f32 %v1449, %v1531
        %v1548 = vmul.f32 %v1452, %v1532
        %v1549 = vmul.f32 %v1457, %v1533
        %v1550 = vmul.f32 %v1460, %v1534
        %v1551 = vmul.f32 %v1465, %v1535
        %v1552 = vmul.f32 %v1468, %v1536
        %v1553 = vmul.f32 %v1473, %v1537
        %v1554 = vmul.f32 %v1476, %v1538
        %v1555 = vmul.f32 %v1481, %v1539
        %v1556 = vmul.f32 %v1484, %v1540
        %v1557 = vmul.f32 %v1489, %v1541
        %v1558 = vmul.f32 %v1492, %v1542
        %v1559 = vmul.f32 %v1543, 0.16666667
        %v1560 = vmul.f32 %v1544, 0.16666667
        %v1561 = vmul.f32 %v1545, 0.16666667
        %v1562 = vmul.f32 %v1546, 0.16666667
        %v1563 = vmul.f32 %v1547, 0.16666667
        %v1564 = vmul.f32 %v1548, 0.16666667
        %v1565 = vmul.f32 %v1549, 0.16666667
        %v1566 = vmul.f32 %v1550, 0.16666667
        %v1567 = vmul.f32 %v1551, 0.16666667
        %v1568 = vmul.f32 %v1552, 0.16666667
        %v1569 = vmul.f32 %v1553, 0.16666667
        %v1570 = vmul.f32 %v1554, 0.16666667
        %v1571 = vmul.f32 %v1555, 0.16666667
        %v1572 = vmul.f32 %v1556, 0.16666667
        %v1573 = vmul.f32 %v1557, 0.16666667
        %v1574 = vmul.f32 %v1558, 0.16666667
        %1575 = vst [vmem:[%s258] sm:$0xff] %v1559
        %1576 = vst [vmem:[%s258 + $0x8] sm:$0xff] %v1560
        %1577 = vst [vmem:[%s258 + $0x10] sm:$0xff] %v1561
        %1578 = vst [vmem:[%s258 + $0x18] sm:$0xff] %v1562
        %1579 = vst [vmem:[%s258 + $0x20] sm:$0xff] %v1563
        %1580 = vst [vmem:[%s258 + $0x28] sm:$0xff] %v1564
        %1581 = vst [vmem:[%s258 + $0x30] sm:$0xff] %v1565
        %1582 = vst [vmem:[%s258 + $0x38] sm:$0xff] %v1566
        %1583 = vst [vmem:[%s258 + $0x40] sm:$0xff] %v1567
        %1584 = vst [vmem:[%s258 + $0x48] sm:$0xff] %v1568
        %1585 = vst [vmem:[%s258 + $0x50] sm:$0xff] %v1569
        %1586 = vst [vmem:[%s258 + $0x58] sm:$0xff] %v1570
        %1587 = vst [vmem:[%s258 + $0x60] sm:$0xff] %v1571
        %1588 = vst [vmem:[%s258 + $0x68] sm:$0xff] %v1572
        %1589 = vst [vmem:[%s258 + $0x70] sm:$0xff] %v1573
        %1590 = vst [vmem:[%s258 + $0x78] sm:$0xff] %v1574
        %s1591 = sand.u32 %s133, 1
        %s1592 = scalar_lea.sflag [#allocation5], %s1591
        %s1593 = sand.u32 %s133, 1
        %s1594 = smul.addr %s1593, 128
        %s1595 = scalar_lea.vmem [#allocation9], %s1594
        // Predicated region
        $region53: #{tpu_custom_call.1} parent=35 // pred_check
          %p1596 = pneg %p143
        $region54: #{tpu_custom_call.1} parent=35 // pred_check_branch
          %1598 = sbr.rel (%p1596) target = $region56
        $region55: #{tpu_custom_call.1} parent=35 // pred_region
          %s1599 = smul.u32 8, %s27
          %s1601 = ssub.s32 2048, 2048
          %1602 = vsyncadd %s1592, %s1601
          %s1603 = smul.addr %s1599, 2
          %s1604 = smul.addr %s26, 32
          %s1605 = sadd.s32 %s1603, %s1604
          %s1606 = smul.addr %s1605, 128
          %s1607 = scalar_lea.hbm %s4, %s1606
          %s1608 = sshll.u32 %s1595, 4
          %s1609 = int_to_ptr.vmem [resolvable:$true] %s1608
          %1614 = dma.vmem_to_hbm [thread:$0]  %s1609, 2048, %s1607, %s1592, 128, 128, 8
        $region56: #{tpu_custom_call.1} parent=35 // pred_fallthru
          _
      $region36: #{tpu_custom_call.1} parent=5 // pred_fallthru
        _
      %p1615 = scmp.le.s32.totalorder 2, %s17
      // Predicated region
      $region57: #{tpu_custom_call.1} parent=5 // pred_check
        %p1616 = pneg %p1615
      $region58: #{tpu_custom_call.1} parent=5 // pred_check_branch
        %1618 = sbr.rel (%p1616) target = $region60
      $region59: #{tpu_custom_call.1} parent=5 // pred_region
        %s1619 = ssub.s32 %s17, 2
        // Predicated region
        $region61: #{tpu_custom_call.1} parent=59 // pred_check
          %p1620 = pneg %p149
        $region62: #{tpu_custom_call.1} parent=59 // pred_check_branch
          %1622 = sbr.rel (%p1620) target = $region64
        $region63: #{tpu_custom_call.1} parent=59 // pred_region
          %s1623 = sand.u32 %s134, 1
          %s1624 = scalar_lea.sflag [#allocation5], %s1623
          %s1625 = sand.u32 %s134, 1
          %s1626 = smul.addr %s1625, 128
          %s1627 = scalar_lea.vmem [#allocation9], %s1626
          %1628 = dma.done %s1624, 2048
        $region64: #{tpu_custom_call.1} parent=59 // pred_fallthru
          _
      $region60: #{tpu_custom_call.1} parent=5 // pred_fallthru
        _
    $region6: #{tpu_custom_call.1} parent=1 // loop_footer
      %s21 = sadd.s32 1, %s17
    $region7: #{tpu_custom_call.1} parent=1 // loop_footer_branch
      %16 = sbr.rel target = $region3
    $region8: #{tpu_custom_call.1} parent=1 // loop_exit
      _
    %1629 = vsyncpa [#allocation4], 1
    %s1630 = scalar_lea.sflag [#allocation4], 1
    %1631 = vsyncpa %s1630, 1
    %1632 = vsyncpa [#allocation7], 1
    %1633 = vsyncpa [#allocation5], 1
    %s1634 = scalar_lea.sflag [#allocation5], 1
    %1635 = vsyncpa %s1634, 1

</llo_original>
